<compile_context>
chip_gen: v5e
topology: v5e:2x2
jax: 0.10.0
libtpu: 0.0.40
codegen_flags: <defaults>
</compile_context>

<pallas_src>
import functools
import math

import numpy as np
import jax
import jax.numpy as jnp
from jax import lax
from jax.experimental import pallas as pl
from jax.experimental.pallas import tpu as pltpu


def _round_up(n, m):
    return ((n + m - 1) // m) * m


def gru_fc_kernel(x_ref, wih_ref, whh_ref, gbias_ref, bhn_ref, wfc_ref, bfc_ref,
                  out_ref, gi_scr, h_scr, *, seq_len):
    """One grid step `s` (grid has n_chunks + 1 steps):

      1. runs the recurrence for time-chunk `s-1` using the input-gate
         pre-activations stored in gi_scr by step `s-1` (at s == 0 this chain is
         a throw-away prologue: its gi slot is uninitialized and h is not
         committed), with the hidden state carried in vregs across the unrolled
         time loop;
      2. computes the input projection for chunk `s` (one chunk ahead of the
         recurrence) into the other gi_scr slot, so the MXU matmul can be
         scheduled under the recurrence's latency bubbles.

    Shapes (all padded):
      x_ref    : (Tc*Bp, I)      bf16  time-major chunk (clamped at the last step)
      wih_ref  : (I,  3*Hp)      bf16
      whh_ref  : (Hp, 3*Hp)      bf16
      gbias_ref: (1,  3*Hp)      f32   [b_ir+b_hr | b_iz+b_hz | b_in]
      bhn_ref  : (1,  Hp)        f32   b_hn (must stay inside the r*() term)
      wfc_ref  : (Hp, Op)        bf16
      bfc_ref  : (1,  Op)        f32
      out_ref  : (Bp, Op)        f32
      gi_scr   : (2*Tc*Bp, 3*Hp) f32   double-buffered input pre-activations
      h_scr    : (Bp, Hp)        f32   hidden state carried across grid steps
    """
    s = pl.program_id(0)
    n_steps = pl.num_programs(0)          # n_chunks + 1
    b_pad, h_pad = h_scr.shape
    chunk_rows = x_ref.shape[0]
    t_chunk = chunk_rows // b_pad
    mask_tail = (seq_len % t_chunk) != 0  # trace-time flag: padded tail steps?

    @pl.when(s == 0)
    def _init():
        # h_0 = zeros (PyTorch default when no initial hidden state is given).
        h_scr[...] = jnp.zeros_like(h_scr)

    # ------------- recurrence for chunk s-1 (h carried in vregs) -------------
    r_slot = lax.rem(s + 1, 2)            # == (s - 1) % 2 for s >= 0
    r_base = r_slot * chunk_rows
    bhn = bhn_ref[...]                    # (1, Hp), broadcast hoisted out of loop
    h = h_scr[...]                        # single VMEM load; loop runs in vregs

    # TODO(synk): if B_pad >= 16, split the batch into 2+ independent sub-tiles
    # and interleave their per-step updates here (two recurrence chains per step)
    # to better overlap MXU fill/drain with EUP sigmoid/tanh latency.
    for t in range(t_chunk):
        row = pl.multiple_of(r_base + t * b_pad, 8)
        gi = gi_scr[pl.ds(row, b_pad), :]                       # (Bp, 3*Hp) f32
        gh = jnp.dot(h.astype(whh_ref.dtype), whh_ref[...],
                     preferred_element_type=jnp.float32)        # (Bp, 3*Hp) f32
        # Lane-aligned gate slices (h_pad is a multiple of 128).
        r = jax.nn.sigmoid(gi[:, :h_pad] + gh[:, :h_pad])
        z = jax.nn.sigmoid(gi[:, h_pad:2 * h_pad] + gh[:, h_pad:2 * h_pad])
        n = jnp.tanh(gi[:, 2 * h_pad:] + r * (gh[:, 2 * h_pad:] + bhn))
        h_new = (1.0 - z) * n + z * h
        if mask_tail:
            # Padded tail timesteps (t_global >= seq_len) must not change h.
            keep = ((s - 1) * t_chunk + t < seq_len).astype(jnp.float32)
            h_new = keep * h_new + (1.0 - keep) * h
        h = h_new

    # ----- input projection for chunk s (consumed by the NEXT grid step) -----
    # Placed in the same straight-line region as the recurrence: only the gi_scr
    # store is ordered behind the recurrence's gi loads (anti-dependence); the
    # matmul itself is free to overlap.  At the final grid step this writes an
    # unused slot (the x block index is clamped in the wrapper) - cheap waste.
    w_slot = lax.rem(s, 2)
    gi_next = (jnp.dot(x_ref[...], wih_ref[...],
                       preferred_element_type=jnp.float32) + gbias_ref[...])
    gi_scr[pl.ds(pl.multiple_of(w_slot * chunk_rows, 8), chunk_rows), :] = gi_next

    # Commit h only for real chunks; step 0 is the pipeline prologue (its gi slot
    # is uninitialized garbage) and h_scr must stay at the zeros written above.
    @pl.when(s >= 1)
    def _commit():
        h_scr[...] = h

    # --------------------- fc head on the final hidden state -----------------
    @pl.when(s == n_steps - 1)
    def _finalize():
        out_ref[...] = (
            jnp.dot(h.astype(wfc_ref.dtype), wfc_ref[...],
                    preferred_element_type=jnp.float32)
            + bfc_ref[...]).astype(out_ref.dtype)


def gru_model_forward(x, params, *, time_chunk_target=32):
    """x: (B, T, I) float32.  Returns (B, O) float32 (matches the PyTorch module)."""
    w_ih, w_hh = params["w_ih"], params["w_hh"]      # (I, 3H), (H, 3H), gates [r|z|n]
    b_ih, b_hh = params["b_ih"], params["b_hh"]      # (3H,)
    w_fc, b_fc = params["w_fc"], params["b_fc"]      # (H, O), (O,)

    B, T, I = x.shape
    H = w_hh.shape[0]
    O = w_fc.shape[1]

    B_pad = _round_up(max(B, 8), 8)      # sublane alignment
    H_pad = _round_up(H, 128)            # lane alignment for gate slices
    O_pad = _round_up(O, 128)            # lane-dense (unmasked) output stores

    # Fixed time chunk; T padded up to a multiple of it (padded steps are masked
    # in-kernel) -> no Tc=1 cliff for prime / awkward T.
    Tc = min(time_chunk_target, T)
    T_pad = _round_up(T, Tc)
    n_chunks = T_pad // Tc
    n_steps = n_chunks + 1               # +1 pipeline prologue/epilogue step
    chunk_rows = Tc * B_pad
    last_chunk = n_chunks - 1

    # --- weight / bias layout: gate g occupies lanes [g*H_pad, g*H_pad + H) ---
    def pad_gate_cols(w):                # (rows, 3H) -> (rows, 3*H_pad)
        parts = jnp.split(w, 3, axis=-1)
        return jnp.concatenate(
            [jnp.pad(p, ((0, 0), (0, H_pad - H))) for p in parts], axis=-1)

    wih_p = pad_gate_cols(w_ih).astype(jnp.bfloat16)                   # (I, 3*H_pad)
    whh_p = jnp.pad(pad_gate_cols(w_hh),
                    ((0, H_pad - H), (0, 0))).astype(jnp.bfloat16)     # (H_pad, 3*H_pad)

    # Fold b_hr / b_hz into the precomputed input-gate bias; keep b_hn separate
    # (it must stay inside the r*( ) term of the n-gate).
    b_ir, b_iz, b_in = jnp.split(b_ih, 3)
    b_hr, b_hz, b_hn = jnp.split(b_hh, 3)
    gbias = jnp.concatenate([
        jnp.pad(b_ir + b_hr, (0, H_pad - H)),
        jnp.pad(b_iz + b_hz, (0, H_pad - H)),
        jnp.pad(b_in, (0, H_pad - H))]).reshape(1, -1).astype(jnp.float32)
    bhn_p = jnp.pad(b_hn, (0, H_pad - H)).reshape(1, -1).astype(jnp.float32)

    wfc_p = jnp.pad(w_fc, ((0, H_pad - H), (0, O_pad - O))).astype(jnp.bfloat16)
    bfc_p = jnp.pad(b_fc, (0, O_pad - O)).reshape(1, -1).astype(jnp.float32)

    # Time-major, batch/time-padded, bf16 input laid out as (T_pad*B_pad, I) so
    # each timestep is a contiguous, sublane-aligned block of B_pad rows.
    # TODO(synk): for very long sequences fuse this relayout into the producer
    # (or use a 3-D BlockSpec + in-kernel transpose) to avoid the extra HBM pass.
    x_p = jnp.pad(x, ((0, B_pad - B), (0, T_pad - T), (0, 0)))
    x_tm = (jnp.transpose(x_p, (1, 0, 2))
            .reshape(T_pad * B_pad, I).astype(jnp.bfloat16))

    # Honest VMEM budget (weights single-buffered, x/out double-buffered,
    # gi double buffer + h carry) plus headroom for compiler scratch.
    def nbytes(shape, dtype):
        return math.prod(shape) * jnp.dtype(dtype).itemsize
    resident = (
        2 * nbytes((chunk_rows, I), jnp.bfloat16)
        + nbytes((I, 3 * H_pad), jnp.bfloat16)
        + nbytes((H_pad, 3 * H_pad), jnp.bfloat16)
        + nbytes((H_pad, O_pad), jnp.bfloat16)
        + nbytes((1, 3 * H_pad), jnp.float32)
        + nbytes((1, H_pad), jnp.float32)
        + nbytes((1, O_pad), jnp.float32)
        + 2 * nbytes((B_pad, O_pad), jnp.float32)
        + nbytes((2 * chunk_rows, 3 * H_pad), jnp.float32)
        + nbytes((B_pad, H_pad), jnp.float32))
    vmem_limit = int(min(max(resident + (resident >> 2) + (4 << 20), 16 << 20),
                         100 << 20))

    kernel = functools.partial(gru_fc_kernel, seq_len=T)
    inv = dict(pipeline_mode=pl.Buffered(1))   # single-buffer invariant operands

    out_padded = pl.pallas_call(
        kernel,
        out_shape=jax.ShapeDtypeStruct((B_pad, O_pad), jnp.float32),
        grid=(n_steps,),
        in_specs=[
            # x chunk for the one-chunk-ahead projection (clamped at last step).
            pl.BlockSpec((chunk_rows, I),
                         lambda s: (jnp.minimum(s, last_chunk), 0)),
            pl.BlockSpec((I, 3 * H_pad), lambda s: (0, 0), **inv),
            pl.BlockSpec((H_pad, 3 * H_pad), lambda s: (0, 0), **inv),
            pl.BlockSpec((1, 3 * H_pad), lambda s: (0, 0), **inv),
            pl.BlockSpec((1, H_pad), lambda s: (0, 0), **inv),
            pl.BlockSpec((H_pad, O_pad), lambda s: (0, 0), **inv),
            pl.BlockSpec((1, O_pad), lambda s: (0, 0), **inv),
        ],
        out_specs=pl.BlockSpec((B_pad, O_pad), lambda s: (0, 0)),
        scratch_shapes=[
            pltpu.VMEM((2 * chunk_rows, 3 * H_pad), jnp.float32),  # gi double buffer
            pltpu.VMEM((B_pad, H_pad), jnp.float32),               # hidden-state carry
        ],
        compiler_params=pltpu.CompilerParams(
            dimension_semantics=("arbitrary",),                    # time recurrence
            vmem_limit_bytes=vmem_limit),
    )(x_tm, wih_p, whh_p, gbias, bhn_p, wfc_p, bfc_p)

    # TODO(synk): for large-batch serving on v7x, add a leading 'parallel' grid
    # axis over batch tiles (needs B_pad >= 16) so both TensorCores run
    # independent shards; keep the time axis 'arbitrary' as the trailing axis.
    return out_padded[:B, :O]


def init_params(key, input_size, hidden_size, output_size):
    """Deterministic init mimicking PyTorch's U(-1/sqrt(H), 1/sqrt(H))."""
    ks = jax.random.split(key, 6)
    s = 1.0 / np.sqrt(hidden_size)
    H, I, O = hidden_size, input_size, output_size
    # Stored already transposed for `x @ W` in the kernel.  Gate order [r|z|n].
    return {
        "w_ih": jax.random.uniform(ks[0], (I, 3 * H), jnp.float32, -s, s),
        "w_hh": jax.random.uniform(ks[1], (H, 3 * H), jnp.float32, -s, s),
        "b_ih": jax.random.uniform(ks[2], (3 * H,), jnp.float32, -s, s),
        "b_hh": jax.random.uniform(ks[3], (3 * H,), jnp.float32, -s, s),
        "w_fc": jax.random.uniform(ks[4], (H, O), jnp.float32, -s, s),
        "b_fc": jax.random.uniform(ks[5], (O,), jnp.float32, -s, s),
    }


def gru_model_reference(x, params):
    """Pure-JAX f32 reference of the same forward pass (for correctness check)."""
    w_ih, w_hh = params["w_ih"], params["w_hh"]
    b_ih, b_hh = params["b_ih"], params["b_hh"]
    w_fc, b_fc = params["w_fc"], params["b_fc"]
    B, T, I = x.shape
    H = w_hh.shape[0]

    def step(h, xt):
        gi = xt @ w_ih + b_ih
        gh = h @ w_hh + b_hh
        r = jax.nn.sigmoid(gi[:, :H] + gh[:, :H])
        z = jax.nn.sigmoid(gi[:, H:2 * H] + gh[:, H:2 * H])
        n = jnp.tanh(gi[:, 2 * H:] + r * gh[:, 2 * H:])
        h_new = (1.0 - z) * n + z * h
        return h_new, None

    h0 = jnp.zeros((B, H), jnp.float32)
    h_last, _ = lax.scan(step, h0, jnp.transpose(x, (1, 0, 2)))
    return h_last @ w_fc + b_fc


if __name__ == "__main__":
    # Small shapes consistent with the module: (batch, seq, input_size).
    B, T, I, H, O = 2, 8, 16, 32, 4

    key = jax.random.PRNGKey(0)
    k_x, k_p = jax.random.split(key)
    x = jax.random.normal(k_x, (B, T, I), jnp.float32)
    params = init_params(k_p, I, H, O)

    out = gru_model_forward(x, params)
    out = jax.block_until_ready(out)

    ref = gru_model_reference(x, params)
    # bf16 MXU operands (f32 accumulation / f32 gate math) -> looser tolerance
    # than a pure-f32 kernel; over very long T the per-step bf16 re-quantization
    # of h compounds (acceptable for inference; use an f32 Whh matmul if not).
    np.testing.assert_allclose(np.asarray(out), np.asarray(ref),
                               rtol=5e-2, atol=2e-2)
    print("KERNEL_OK")
</pallas_src>

<mosaic_0001>
module attributes {stable_mosaic.version = 11 : i64} {
  func.func @gru_fc_kernel(%arg0: i32, %arg1: memref<64x16xbf16, #tpu.memory_space<vmem>>, %arg2: memref<16x384xbf16, #tpu.memory_space<vmem>>, %arg3: memref<128x384xbf16, #tpu.memory_space<vmem>>, %arg4: memref<1x384xf32, #tpu.memory_space<vmem>>, %arg5: memref<1x128xf32, #tpu.memory_space<vmem>>, %arg6: memref<128x128xbf16, #tpu.memory_space<vmem>>, %arg7: memref<1x128xf32, #tpu.memory_space<vmem>>, %arg8: memref<8x128xf32, #tpu.memory_space<vmem>>, %arg9: memref<128x384xf32, #tpu.memory_space<vmem>>, %arg10: memref<8x128xf32, #tpu.memory_space<vmem>>) attributes {dimension_semantics = [#tpu.dimension_semantics<arbitrary>], iteration_bounds = array<i64: 2>, scalar_prefetch = 0 : i64, scratch_operands = 2 : i64, tpu.core_type = #tpu.core_type<tc>, window_params = [{transform_indices = @transform_0, window_bounds = array<i64: 64, 16>}, {pipeline_mode = #tpu.pipeline_mode<synchronous>, transform_indices = @transform_1, window_bounds = array<i64: 16, 384>}, {pipeline_mode = #tpu.pipeline_mode<synchronous>, transform_indices = @transform_2, window_bounds = array<i64: 128, 384>}, {pipeline_mode = #tpu.pipeline_mode<synchronous>, transform_indices = @transform_3, window_bounds = array<i64: 1, 384>}, {pipeline_mode = #tpu.pipeline_mode<synchronous>, transform_indices = @transform_4, window_bounds = array<i64: 1, 128>}, {pipeline_mode = #tpu.pipeline_mode<synchronous>, transform_indices = @transform_5, window_bounds = array<i64: 128, 128>}, {pipeline_mode = #tpu.pipeline_mode<synchronous>, transform_indices = @transform_6, window_bounds = array<i64: 1, 128>}, {pipeline_mode = #tpu.pipeline_mode<synchronous>, transform_indices = @transform_7, window_bounds = array<i64: 8, 128>}]} {
    %c0_i32 = arith.constant 0 : i32
    %0 = arith.cmpi eq, %arg0, %c0_i32 : i32
    %1 = arith.extui %0 : i1 to i32
    %c0_i32_0 = arith.constant 0 : i32
    %2 = arith.cmpi ne, %1, %c0_i32_0 : i32
    scf.if %2 {
      %cst_74 = arith.constant 0.000000e+00 : f32
      %305 = vector.broadcast %cst_74 : f32 to vector<8x128xf32>
      %c0_75 = arith.constant 0 : index
      %c0_76 = arith.constant 0 : index
      %306 = vector.load %arg10[%c0_75, %c0_76] : memref<8x128xf32, #tpu.memory_space<vmem>>, vector<8x128xf32>
      tpu.vector_store %arg10[%c0_75, %c0_76], %305 {strides = array<i32>} : memref<8x128xf32, #tpu.memory_space<vmem>>, vector<8x128xf32>,
    } else {
    }
    %c1_i32 = arith.constant 1 : i32
    %3 = arith.addi %arg0, %c1_i32 : i32
    %c2_i32 = arith.constant 2 : i32
    %4 = arith.remsi %3, %c2_i32 : i32
    %c64_i32 = arith.constant 64 : i32
    %5 = arith.muli %4, %c64_i32 : i32
    %c0 = arith.constant 0 : index
    %c0_1 = arith.constant 0 : index
    %6 = vector.load %arg5[%c0, %c0_1] : memref<1x128xf32, #tpu.memory_space<vmem>>, vector<1x128xf32>
    %c0_2 = arith.constant 0 : index
    %c0_3 = arith.constant 0 : index
    %7 = vector.load %arg10[%c0_2, %c0_3] : memref<8x128xf32, #tpu.memory_space<vmem>>, vector<8x128xf32>
    %c0_i32_4 = arith.constant 0 : i32
    %8 = arith.addi %5, %c0_i32_4 : i32
    %9 = tpu.assume_multiple %8, 8 : i32
    %10 = arith.index_cast %9 : i32 to index
    %c0_5 = arith.constant 0 : index
    %11 = vector.load %arg9[%10, %c0_5] : memref<128x384xf32, #tpu.memory_space<vmem>>, vector<8x384xf32>
    %12 = arith.truncf %7 : vector<8x128xf32> to vector<8x128xbf16>
    %c0_6 = arith.constant 0 : index
    %c0_7 = arith.constant 0 : index
    %13 = vector.load %arg3[%c0_6, %c0_7] : memref<128x384xbf16, #tpu.memory_space<vmem>>, vector<128x384xbf16>
    %cst = arith.constant dense<0.000000e+00> : vector<8x384xf32>
    %14 = tpu.matmul %12, %13, %cst {dimension_numbers = #tpu.dot_dimension_numbers<[1], [0], [0], [1], [0, 0, 1, 1], [], []>} : vector<8x128xbf16>, vector<128x384xbf16>, vector<8x384xf32> -> vector<8x384xf32>
    %15 = vector.extract_strided_slice %11 {offsets = [0, 0], sizes = [8, 128], strides = [1, 1]} : vector<8x384xf32> to vector<8x128xf32>
    %16 = vector.extract_strided_slice %14 {offsets = [0, 0], sizes = [8, 128], strides = [1, 1]} : vector<8x384xf32> to vector<8x128xf32>
    %17 = arith.addf %15, %16 : vector<8x128xf32>
    %18 = arith.negf %17 : vector<8x128xf32>
    %19 = math.exp %18 : vector<8x128xf32>
    %cst_8 = arith.constant 1.000000e+00 : f32
    %20 = vector.broadcast %cst_8 : f32 to vector<8x128xf32>
    %21 = arith.addf %20, %19 : vector<8x128xf32>
    %22 = arith.divf %20, %21 : vector<8x128xf32>
    %23 = vector.extract_strided_slice %11 {offsets = [0, 128], sizes = [8, 128], strides = [1, 1]} : vector<8x384xf32> to vector<8x128xf32>
    %24 = vector.extract_strided_slice %14 {offsets = [0, 128], sizes = [8, 128], strides = [1, 1]} : vector<8x384xf32> to vector<8x128xf32>
    %25 = arith.addf %23, %24 : vector<8x128xf32>
    %26 = arith.negf %25 : vector<8x128xf32>
    %27 = math.exp %26 : vector<8x128xf32>
    %cst_9 = arith.constant 1.000000e+00 : f32
    %28 = vector.broadcast %cst_9 : f32 to vector<8x128xf32>
    %29 = arith.addf %28, %27 : vector<8x128xf32>
    %30 = arith.divf %28, %29 : vector<8x128xf32>
    %31 = vector.extract_strided_slice %11 {offsets = [0, 256], sizes = [8, 128], strides = [1, 1]} : vector<8x384xf32> to vector<8x128xf32>
    %32 = vector.extract_strided_slice %14 {offsets = [0, 256], sizes = [8, 128], strides = [1, 1]} : vector<8x384xf32> to vector<8x128xf32>
    %33 = vector.broadcast %6 : vector<1x128xf32> to vector<8x128xf32>
    %34 = arith.addf %32, %33 : vector<8x128xf32>
    %35 = arith.mulf %22, %34 : vector<8x128xf32>
    %36 = arith.addf %31, %35 : vector<8x128xf32>
    %37 = math.tanh %36 : vector<8x128xf32>
    %cst_10 = arith.constant 1.000000e+00 : f32
    %38 = vector.broadcast %cst_10 : f32 to vector<8x128xf32>
    %39 = arith.subf %38, %30 : vector<8x128xf32>
    %40 = arith.mulf %39, %37 : vector<8x128xf32>
    %41 = arith.mulf %30, %7 : vector<8x128xf32>
    %42 = arith.addf %40, %41 : vector<8x128xf32>
    %c8_i32 = arith.constant 8 : i32
    %43 = arith.addi %5, %c8_i32 : i32
    %44 = tpu.assume_multiple %43, 8 : i32
    %45 = arith.index_cast %44 : i32 to index
    %c0_11 = arith.constant 0 : index
    %46 = vector.load %arg9[%45, %c0_11] : memref<128x384xf32, #tpu.memory_space<vmem>>, vector<8x384xf32>
    %47 = arith.truncf %42 : vector<8x128xf32> to vector<8x128xbf16>
    %c0_12 = arith.constant 0 : index
    %c0_13 = arith.constant 0 : index
    %48 = vector.load %arg3[%c0_12, %c0_13] : memref<128x384xbf16, #tpu.memory_space<vmem>>, vector<128x384xbf16>
    %cst_14 = arith.constant dense<0.000000e+00> : vector<8x384xf32>
    %49 = tpu.matmul %47, %48, %cst_14 {dimension_numbers = #tpu.dot_dimension_numbers<[1], [0], [0], [1], [0, 0, 1, 1], [], []>} : vector<8x128xbf16>, vector<128x384xbf16>, vector<8x384xf32> -> vector<8x384xf32>
    %50 = vector.extract_strided_slice %46 {offsets = [0, 0], sizes = [8, 128], strides = [1, 1]} : vector<8x384xf32> to vector<8x128xf32>
    %51 = vector.extract_strided_slice %49 {offsets = [0, 0], sizes = [8, 128], strides = [1, 1]} : vector<8x384xf32> to vector<8x128xf32>
    %52 = arith.addf %50, %51 : vector<8x128xf32>
    %53 = arith.negf %52 : vector<8x128xf32>
    %54 = math.exp %53 : vector<8x128xf32>
    %cst_15 = arith.constant 1.000000e+00 : f32
    %55 = vector.broadcast %cst_15 : f32 to vector<8x128xf32>
    %56 = arith.addf %55, %54 : vector<8x128xf32>
    %57 = arith.divf %55, %56 : vector<8x128xf32>
    %58 = vector.extract_strided_slice %46 {offsets = [0, 128], sizes = [8, 128], strides = [1, 1]} : vector<8x384xf32> to vector<8x128xf32>
    %59 = vector.extract_strided_slice %49 {offsets = [0, 128], sizes = [8, 128], strides = [1, 1]} : vector<8x384xf32> to vector<8x128xf32>
    %60 = arith.addf %58, %59 : vector<8x128xf32>
    %61 = arith.negf %60 : vector<8x128xf32>
    %62 = math.exp %61 : vector<8x128xf32>
    %cst_16 = arith.constant 1.000000e+00 : f32
    %63 = vector.broadcast %cst_16 : f32 to vector<8x128xf32>
    %64 = arith.addf %63, %62 : vector<8x128xf32>
    %65 = arith.divf %63, %64 : vector<8x128xf32>
    %66 = vector.extract_strided_slice %46 {offsets = [0, 256], sizes = [8, 128], strides = [1, 1]} : vector<8x384xf32> to vector<8x128xf32>
    %67 = vector.extract_strided_slice %49 {offsets = [0, 256], sizes = [8, 128], strides = [1, 1]} : vector<8x384xf32> to vector<8x128xf32>
    %68 = vector.broadcast %6 : vector<1x128xf32> to vector<8x128xf32>
    %69 = arith.addf %67, %68 : vector<8x128xf32>
    %70 = arith.mulf %57, %69 : vector<8x128xf32>
    %71 = arith.addf %66, %70 : vector<8x128xf32>
    %72 = math.tanh %71 : vector<8x128xf32>
    %cst_17 = arith.constant 1.000000e+00 : f32
    %73 = vector.broadcast %cst_17 : f32 to vector<8x128xf32>
    %74 = arith.subf %73, %65 : vector<8x128xf32>
    %75 = arith.mulf %74, %72 : vector<8x128xf32>
    %76 = arith.mulf %65, %42 : vector<8x128xf32>
    %77 = arith.addf %75, %76 : vector<8x128xf32>
    %c16_i32 = arith.constant 16 : i32
    %78 = arith.addi %5, %c16_i32 : i32
    %79 = tpu.assume_multiple %78, 8 : i32
    %80 = arith.index_cast %79 : i32 to index
    %c0_18 = arith.constant 0 : index
    %81 = vector.load %arg9[%80, %c0_18] : memref<128x384xf32, #tpu.memory_space<vmem>>, vector<8x384xf32>
    %82 = arith.truncf %77 : vector<8x128xf32> to vector<8x128xbf16>
    %c0_19 = arith.constant 0 : index
    %c0_20 = arith.constant 0 : index
    %83 = vector.load %arg3[%c0_19, %c0_20] : memref<128x384xbf16, #tpu.memory_space<vmem>>, vector<128x384xbf16>
    %cst_21 = arith.constant dense<0.000000e+00> : vector<8x384xf32>
    %84 = tpu.matmul %82, %83, %cst_21 {dimension_numbers = #tpu.dot_dimension_numbers<[1], [0], [0], [1], [0, 0, 1, 1], [], []>} : vector<8x128xbf16>, vector<128x384xbf16>, vector<8x384xf32> -> vector<8x384xf32>
    %85 = vector.extract_strided_slice %81 {offsets = [0, 0], sizes = [8, 128], strides = [1, 1]} : vector<8x384xf32> to vector<8x128xf32>
    %86 = vector.extract_strided_slice %84 {offsets = [0, 0], sizes = [8, 128], strides = [1, 1]} : vector<8x384xf32> to vector<8x128xf32>
    %87 = arith.addf %85, %86 : vector<8x128xf32>
    %88 = arith.negf %87 : vector<8x128xf32>
    %89 = math.exp %88 : vector<8x128xf32>
    %cst_22 = arith.constant 1.000000e+00 : f32
    %90 = vector.broadcast %cst_22 : f32 to vector<8x128xf32>
    %91 = arith.addf %90, %89 : vector<8x128xf32>
    %92 = arith.divf %90, %91 : vector<8x128xf32>
    %93 = vector.extract_strided_slice %81 {offsets = [0, 128], sizes = [8, 128], strides = [1, 1]} : vector<8x384xf32> to vector<8x128xf32>
    %94 = vector.extract_strided_slice %84 {offsets = [0, 128], sizes = [8, 128], strides = [1, 1]} : vector<8x384xf32> to vector<8x128xf32>
    %95 = arith.addf %93, %94 : vector<8x128xf32>
    %96 = arith.negf %95 : vector<8x128xf32>
    %97 = math.exp %96 : vector<8x128xf32>
    %cst_23 = arith.constant 1.000000e+00 : f32
    %98 = vector.broadcast %cst_23 : f32 to vector<8x128xf32>
    %99 = arith.addf %98, %97 : vector<8x128xf32>
    %100 = arith.divf %98, %99 : vector<8x128xf32>
    %101 = vector.extract_strided_slice %81 {offsets = [0, 256], sizes = [8, 128], strides = [1, 1]} : vector<8x384xf32> to vector<8x128xf32>
    %102 = vector.extract_strided_slice %84 {offsets = [0, 256], sizes = [8, 128], strides = [1, 1]} : vector<8x384xf32> to vector<8x128xf32>
    %103 = vector.broadcast %6 : vector<1x128xf32> to vector<8x128xf32>
    %104 = arith.addf %102, %103 : vector<8x128xf32>
    %105 = arith.mulf %92, %104 : vector<8x128xf32>
    %106 = arith.addf %101, %105 : vector<8x128xf32>
    %107 = math.tanh %106 : vector<8x128xf32>
    %cst_24 = arith.constant 1.000000e+00 : f32
    %108 = vector.broadcast %cst_24 : f32 to vector<8x128xf32>
    %109 = arith.subf %108, %100 : vector<8x128xf32>
    %110 = arith.mulf %109, %107 : vector<8x128xf32>
    %111 = arith.mulf %100, %77 : vector<8x128xf32>
    %112 = arith.addf %110, %111 : vector<8x128xf32>
    %c24_i32 = arith.constant 24 : i32
    %113 = arith.addi %5, %c24_i32 : i32
    %114 = tpu.assume_multiple %113, 8 : i32
    %115 = arith.index_cast %114 : i32 to index
    %c0_25 = arith.constant 0 : index
    %116 = vector.load %arg9[%115, %c0_25] : memref<128x384xf32, #tpu.memory_space<vmem>>, vector<8x384xf32>
    %117 = arith.truncf %112 : vector<8x128xf32> to vector<8x128xbf16>
    %c0_26 = arith.constant 0 : index
    %c0_27 = arith.constant 0 : index
    %118 = vector.load %arg3[%c0_26, %c0_27] : memref<128x384xbf16, #tpu.memory_space<vmem>>, vector<128x384xbf16>
    %cst_28 = arith.constant dense<0.000000e+00> : vector<8x384xf32>
    %119 = tpu.matmul %117, %118, %cst_28 {dimension_numbers = #tpu.dot_dimension_numbers<[1], [0], [0], [1], [0, 0, 1, 1], [], []>} : vector<8x128xbf16>, vector<128x384xbf16>, vector<8x384xf32> -> vector<8x384xf32>
    %120 = vector.extract_strided_slice %116 {offsets = [0, 0], sizes = [8, 128], strides = [1, 1]} : vector<8x384xf32> to vector<8x128xf32>
    %121 = vector.extract_strided_slice %119 {offsets = [0, 0], sizes = [8, 128], strides = [1, 1]} : vector<8x384xf32> to vector<8x128xf32>
    %122 = arith.addf %120, %121 : vector<8x128xf32>
    %123 = arith.negf %122 : vector<8x128xf32>
    %124 = math.exp %123 : vector<8x128xf32>
    %cst_29 = arith.constant 1.000000e+00 : f32
    %125 = vector.broadcast %cst_29 : f32 to vector<8x128xf32>
    %126 = arith.addf %125, %124 : vector<8x128xf32>
    %127 = arith.divf %125, %126 : vector<8x128xf32>
    %128 = vector.extract_strided_slice %116 {offsets = [0, 128], sizes = [8, 128], strides = [1, 1]} : vector<8x384xf32> to vector<8x128xf32>
    %129 = vector.extract_strided_slice %119 {offsets = [0, 128], sizes = [8, 128], strides = [1, 1]} : vector<8x384xf32> to vector<8x128xf32>
    %130 = arith.addf %128, %129 : vector<8x128xf32>
    %131 = arith.negf %130 : vector<8x128xf32>
    %132 = math.exp %131 : vector<8x128xf32>
    %cst_30 = arith.constant 1.000000e+00 : f32
    %133 = vector.broadcast %cst_30 : f32 to vector<8x128xf32>
    %134 = arith.addf %133, %132 : vector<8x128xf32>
    %135 = arith.divf %133, %134 : vector<8x128xf32>
    %136 = vector.extract_strided_slice %116 {offsets = [0, 256], sizes = [8, 128], strides = [1, 1]} : vector<8x384xf32> to vector<8x128xf32>
    %137 = vector.extract_strided_slice %119 {offsets = [0, 256], sizes = [8, 128], strides = [1, 1]} : vector<8x384xf32> to vector<8x128xf32>
    %138 = vector.broadcast %6 : vector<1x128xf32> to vector<8x128xf32>
    %139 = arith.addf %137, %138 : vector<8x128xf32>
    %140 = arith.mulf %127, %139 : vector<8x128xf32>
    %141 = arith.addf %136, %140 : vector<8x128xf32>
    %142 = math.tanh %141 : vector<8x128xf32>
    %cst_31 = arith.constant 1.000000e+00 : f32
    %143 = vector.broadcast %cst_31 : f32 to vector<8x128xf32>
    %144 = arith.subf %143, %135 : vector<8x128xf32>
    %145 = arith.mulf %144, %142 : vector<8x128xf32>
    %146 = arith.mulf %135, %112 : vector<8x128xf32>
    %147 = arith.addf %145, %146 : vector<8x128xf32>
    %c32_i32 = arith.constant 32 : i32
    %148 = arith.addi %5, %c32_i32 : i32
    %149 = tpu.assume_multiple %148, 8 : i32
    %150 = arith.index_cast %149 : i32 to index
    %c0_32 = arith.constant 0 : index
    %151 = vector.load %arg9[%150, %c0_32] : memref<128x384xf32, #tpu.memory_space<vmem>>, vector<8x384xf32>
    %152 = arith.truncf %147 : vector<8x128xf32> to vector<8x128xbf16>
    %c0_33 = arith.constant 0 : index
    %c0_34 = arith.constant 0 : index
    %153 = vector.load %arg3[%c0_33, %c0_34] : memref<128x384xbf16, #tpu.memory_space<vmem>>, vector<128x384xbf16>
    %cst_35 = arith.constant dense<0.000000e+00> : vector<8x384xf32>
    %154 = tpu.matmul %152, %153, %cst_35 {dimension_numbers = #tpu.dot_dimension_numbers<[1], [0], [0], [1], [0, 0, 1, 1], [], []>} : vector<8x128xbf16>, vector<128x384xbf16>, vector<8x384xf32> -> vector<8x384xf32>
    %155 = vector.extract_strided_slice %151 {offsets = [0, 0], sizes = [8, 128], strides = [1, 1]} : vector<8x384xf32> to vector<8x128xf32>
    %156 = vector.extract_strided_slice %154 {offsets = [0, 0], sizes = [8, 128], strides = [1, 1]} : vector<8x384xf32> to vector<8x128xf32>
    %157 = arith.addf %155, %156 : vector<8x128xf32>
    %158 = arith.negf %157 : vector<8x128xf32>
    %159 = math.exp %158 : vector<8x128xf32>
    %cst_36 = arith.constant 1.000000e+00 : f32
    %160 = vector.broadcast %cst_36 : f32 to vector<8x128xf32>
    %161 = arith.addf %160, %159 : vector<8x128xf32>
    %162 = arith.divf %160, %161 : vector<8x128xf32>
    %163 = vector.extract_strided_slice %151 {offsets = [0, 128], sizes = [8, 128], strides = [1, 1]} : vector<8x384xf32> to vector<8x128xf32>
    %164 = vector.extract_strided_slice %154 {offsets = [0, 128], sizes = [8, 128], strides = [1, 1]} : vector<8x384xf32> to vector<8x128xf32>
    %165 = arith.addf %163, %164 : vector<8x128xf32>
    %166 = arith.negf %165 : vector<8x128xf32>
    %167 = math.exp %166 : vector<8x128xf32>
    %cst_37 = arith.constant 1.000000e+00 : f32
    %168 = vector.broadcast %cst_37 : f32 to vector<8x128xf32>
    %169 = arith.addf %168, %167 : vector<8x128xf32>
    %170 = arith.divf %168, %169 : vector<8x128xf32>
    %171 = vector.extract_strided_slice %151 {offsets = [0, 256], sizes = [8, 128], strides = [1, 1]} : vector<8x384xf32> to vector<8x128xf32>
    %172 = vector.extract_strided_slice %154 {offsets = [0, 256], sizes = [8, 128], strides = [1, 1]} : vector<8x384xf32> to vector<8x128xf32>
    %173 = vector.broadcast %6 : vector<1x128xf32> to vector<8x128xf32>
    %174 = arith.addf %172, %173 : vector<8x128xf32>
    %175 = arith.mulf %162, %174 : vector<8x128xf32>
    %176 = arith.addf %171, %175 : vector<8x128xf32>
    %177 = math.tanh %176 : vector<8x128xf32>
    %cst_38 = arith.constant 1.000000e+00 : f32
    %178 = vector.broadcast %cst_38 : f32 to vector<8x128xf32>
    %179 = arith.subf %178, %170 : vector<8x128xf32>
    %180 = arith.mulf %179, %177 : vector<8x128xf32>
    %181 = arith.mulf %170, %147 : vector<8x128xf32>
    %182 = arith.addf %180, %181 : vector<8x128xf32>
    %c40_i32 = arith.constant 40 : i32
    %183 = arith.addi %5, %c40_i32 : i32
    %184 = tpu.assume_multiple %183, 8 : i32
    %185 = arith.index_cast %184 : i32 to index
    %c0_39 = arith.constant 0 : index
    %186 = vector.load %arg9[%185, %c0_39] : memref<128x384xf32, #tpu.memory_space<vmem>>, vector<8x384xf32>
    %187 = arith.truncf %182 : vector<8x128xf32> to vector<8x128xbf16>
    %c0_40 = arith.constant 0 : index
    %c0_41 = arith.constant 0 : index
    %188 = vector.load %arg3[%c0_40, %c0_41] : memref<128x384xbf16, #tpu.memory_space<vmem>>, vector<128x384xbf16>
    %cst_42 = arith.constant dense<0.000000e+00> : vector<8x384xf32>
    %189 = tpu.matmul %187, %188, %cst_42 {dimension_numbers = #tpu.dot_dimension_numbers<[1], [0], [0], [1], [0, 0, 1, 1], [], []>} : vector<8x128xbf16>, vector<128x384xbf16>, vector<8x384xf32> -> vector<8x384xf32>
    %190 = vector.extract_strided_slice %186 {offsets = [0, 0], sizes = [8, 128], strides = [1, 1]} : vector<8x384xf32> to vector<8x128xf32>
    %191 = vector.extract_strided_slice %189 {offsets = [0, 0], sizes = [8, 128], strides = [1, 1]} : vector<8x384xf32> to vector<8x128xf32>
    %192 = arith.addf %190, %191 : vector<8x128xf32>
    %193 = arith.negf %192 : vector<8x128xf32>
    %194 = math.exp %193 : vector<8x128xf32>
    %cst_43 = arith.constant 1.000000e+00 : f32
    %195 = vector.broadcast %cst_43 : f32 to vector<8x128xf32>
    %196 = arith.addf %195, %194 : vector<8x128xf32>
    %197 = arith.divf %195, %196 : vector<8x128xf32>
    %198 = vector.extract_strided_slice %186 {offsets = [0, 128], sizes = [8, 128], strides = [1, 1]} : vector<8x384xf32> to vector<8x128xf32>
    %199 = vector.extract_strided_slice %189 {offsets = [0, 128], sizes = [8, 128], strides = [1, 1]} : vector<8x384xf32> to vector<8x128xf32>
    %200 = arith.addf %198, %199 : vector<8x128xf32>
    %201 = arith.negf %200 : vector<8x128xf32>
    %202 = math.exp %201 : vector<8x128xf32>
    %cst_44 = arith.constant 1.000000e+00 : f32
    %203 = vector.broadcast %cst_44 : f32 to vector<8x128xf32>
    %204 = arith.addf %203, %202 : vector<8x128xf32>
    %205 = arith.divf %203, %204 : vector<8x128xf32>
    %206 = vector.extract_strided_slice %186 {offsets = [0, 256], sizes = [8, 128], strides = [1, 1]} : vector<8x384xf32> to vector<8x128xf32>
    %207 = vector.extract_strided_slice %189 {offsets = [0, 256], sizes = [8, 128], strides = [1, 1]} : vector<8x384xf32> to vector<8x128xf32>
    %208 = vector.broadcast %6 : vector<1x128xf32> to vector<8x128xf32>
    %209 = arith.addf %207, %208 : vector<8x128xf32>
    %210 = arith.mulf %197, %209 : vector<8x128xf32>
    %211 = arith.addf %206, %210 : vector<8x128xf32>
    %212 = math.tanh %211 : vector<8x128xf32>
    %cst_45 = arith.constant 1.000000e+00 : f32
    %213 = vector.broadcast %cst_45 : f32 to vector<8x128xf32>
    %214 = arith.subf %213, %205 : vector<8x128xf32>
    %215 = arith.mulf %214, %212 : vector<8x128xf32>
    %216 = arith.mulf %205, %182 : vector<8x128xf32>
    %217 = arith.addf %215, %216 : vector<8x128xf32>
    %c48_i32 = arith.constant 48 : i32
    %218 = arith.addi %5, %c48_i32 : i32
    %219 = tpu.assume_multiple %218, 8 : i32
    %220 = arith.index_cast %219 : i32 to index
    %c0_46 = arith.constant 0 : index
    %221 = vector.load %arg9[%220, %c0_46] : memref<128x384xf32, #tpu.memory_space<vmem>>, vector<8x384xf32>
    %222 = arith.truncf %217 : vector<8x128xf32> to vector<8x128xbf16>
    %c0_47 = arith.constant 0 : index
    %c0_48 = arith.constant 0 : index
    %223 = vector.load %arg3[%c0_47, %c0_48] : memref<128x384xbf16, #tpu.memory_space<vmem>>, vector<128x384xbf16>
    %cst_49 = arith.constant dense<0.000000e+00> : vector<8x384xf32>
    %224 = tpu.matmul %222, %223, %cst_49 {dimension_numbers = #tpu.dot_dimension_numbers<[1], [0], [0], [1], [0, 0, 1, 1], [], []>} : vector<8x128xbf16>, vector<128x384xbf16>, vector<8x384xf32> -> vector<8x384xf32>
    %225 = vector.extract_strided_slice %221 {offsets = [0, 0], sizes = [8, 128], strides = [1, 1]} : vector<8x384xf32> to vector<8x128xf32>
    %226 = vector.extract_strided_slice %224 {offsets = [0, 0], sizes = [8, 128], strides = [1, 1]} : vector<8x384xf32> to vector<8x128xf32>
    %227 = arith.addf %225, %226 : vector<8x128xf32>
    %228 = arith.negf %227 : vector<8x128xf32>
    %229 = math.exp %228 : vector<8x128xf32>
    %cst_50 = arith.constant 1.000000e+00 : f32
    %230 = vector.broadcast %cst_50 : f32 to vector<8x128xf32>
    %231 = arith.addf %230, %229 : vector<8x128xf32>
    %232 = arith.divf %230, %231 : vector<8x128xf32>
    %233 = vector.extract_strided_slice %221 {offsets = [0, 128], sizes = [8, 128], strides = [1, 1]} : vector<8x384xf32> to vector<8x128xf32>
    %234 = vector.extract_strided_slice %224 {offsets = [0, 128], sizes = [8, 128], strides = [1, 1]} : vector<8x384xf32> to vector<8x128xf32>
    %235 = arith.addf %233, %234 : vector<8x128xf32>
    %236 = arith.negf %235 : vector<8x128xf32>
    %237 = math.exp %236 : vector<8x128xf32>
    %cst_51 = arith.constant 1.000000e+00 : f32
    %238 = vector.broadcast %cst_51 : f32 to vector<8x128xf32>
    %239 = arith.addf %238, %237 : vector<8x128xf32>
    %240 = arith.divf %238, %239 : vector<8x128xf32>
    %241 = vector.extract_strided_slice %221 {offsets = [0, 256], sizes = [8, 128], strides = [1, 1]} : vector<8x384xf32> to vector<8x128xf32>
    %242 = vector.extract_strided_slice %224 {offsets = [0, 256], sizes = [8, 128], strides = [1, 1]} : vector<8x384xf32> to vector<8x128xf32>
    %243 = vector.broadcast %6 : vector<1x128xf32> to vector<8x128xf32>
    %244 = arith.addf %242, %243 : vector<8x128xf32>
    %245 = arith.mulf %232, %244 : vector<8x128xf32>
    %246 = arith.addf %241, %245 : vector<8x128xf32>
    %247 = math.tanh %246 : vector<8x128xf32>
    %cst_52 = arith.constant 1.000000e+00 : f32
    %248 = vector.broadcast %cst_52 : f32 to vector<8x128xf32>
    %249 = arith.subf %248, %240 : vector<8x128xf32>
    %250 = arith.mulf %249, %247 : vector<8x128xf32>
    %251 = arith.mulf %240, %217 : vector<8x128xf32>
    %252 = arith.addf %250, %251 : vector<8x128xf32>
    %c56_i32 = arith.constant 56 : i32
    %253 = arith.addi %5, %c56_i32 : i32
    %254 = tpu.assume_multiple %253, 8 : i32
    %255 = arith.index_cast %254 : i32 to index
    %c0_53 = arith.constant 0 : index
    %256 = vector.load %arg9[%255, %c0_53] : memref<128x384xf32, #tpu.memory_space<vmem>>, vector<8x384xf32>
    %257 = arith.truncf %252 : vector<8x128xf32> to vector<8x128xbf16>
    %c0_54 = arith.constant 0 : index
    %c0_55 = arith.constant 0 : index
    %258 = vector.load %arg3[%c0_54, %c0_55] : memref<128x384xbf16, #tpu.memory_space<vmem>>, vector<128x384xbf16>
    %cst_56 = arith.constant dense<0.000000e+00> : vector<8x384xf32>
    %259 = tpu.matmul %257, %258, %cst_56 {dimension_numbers = #tpu.dot_dimension_numbers<[1], [0], [0], [1], [0, 0, 1, 1], [], []>} : vector<8x128xbf16>, vector<128x384xbf16>, vector<8x384xf32> -> vector<8x384xf32>
    %260 = vector.extract_strided_slice %256 {offsets = [0, 0], sizes = [8, 128], strides = [1, 1]} : vector<8x384xf32> to vector<8x128xf32>
    %261 = vector.extract_strided_slice %259 {offsets = [0, 0], sizes = [8, 128], strides = [1, 1]} : vector<8x384xf32> to vector<8x128xf32>
    %262 = arith.addf %260, %261 : vector<8x128xf32>
    %263 = arith.negf %262 : vector<8x128xf32>
    %264 = math.exp %263 : vector<8x128xf32>
    %cst_57 = arith.constant 1.000000e+00 : f32
    %265 = vector.broadcast %cst_57 : f32 to vector<8x128xf32>
    %266 = arith.addf %265, %264 : vector<8x128xf32>
    %267 = arith.divf %265, %266 : vector<8x128xf32>
    %268 = vector.extract_strided_slice %256 {offsets = [0, 128], sizes = [8, 128], strides = [1, 1]} : vector<8x384xf32> to vector<8x128xf32>
    %269 = vector.extract_strided_slice %259 {offsets = [0, 128], sizes = [8, 128], strides = [1, 1]} : vector<8x384xf32> to vector<8x128xf32>
    %270 = arith.addf %268, %269 : vector<8x128xf32>
    %271 = arith.negf %270 : vector<8x128xf32>
    %272 = math.exp %271 : vector<8x128xf32>
    %cst_58 = arith.constant 1.000000e+00 : f32
    %273 = vector.broadcast %cst_58 : f32 to vector<8x128xf32>
    %274 = arith.addf %273, %272 : vector<8x128xf32>
    %275 = arith.divf %273, %274 : vector<8x128xf32>
    %276 = vector.extract_strided_slice %256 {offsets = [0, 256], sizes = [8, 128], strides = [1, 1]} : vector<8x384xf32> to vector<8x128xf32>
    %277 = vector.extract_strided_slice %259 {offsets = [0, 256], sizes = [8, 128], strides = [1, 1]} : vector<8x384xf32> to vector<8x128xf32>
    %278 = vector.broadcast %6 : vector<1x128xf32> to vector<8x128xf32>
    %279 = arith.addf %277, %278 : vector<8x128xf32>
    %280 = arith.mulf %267, %279 : vector<8x128xf32>
    %281 = arith.addf %276, %280 : vector<8x128xf32>
    %282 = math.tanh %281 : vector<8x128xf32>
    %cst_59 = arith.constant 1.000000e+00 : f32
    %283 = vector.broadcast %cst_59 : f32 to vector<8x128xf32>
    %284 = arith.subf %283, %275 : vector<8x128xf32>
    %285 = arith.mulf %284, %282 : vector<8x128xf32>
    %286 = arith.mulf %275, %252 : vector<8x128xf32>
    %287 = arith.addf %285, %286 : vector<8x128xf32>
    %c2_i32_60 = arith.constant 2 : i32
    %288 = arith.remsi %arg0, %c2_i32_60 : i32
    %c0_61 = arith.constant 0 : index
    %c0_62 = arith.constant 0 : index
    %289 = vector.load %arg1[%c0_61, %c0_62] : memref<64x16xbf16, #tpu.memory_space<vmem>>, vector<64x16xbf16>
    %c0_63 = arith.constant 0 : index
    %c0_64 = arith.constant 0 : index
    %290 = vector.load %arg2[%c0_63, %c0_64] : memref<16x384xbf16, #tpu.memory_space<vmem>>, vector<16x384xbf16>
    %cst_65 = arith.constant dense<0.000000e+00> : vector<64x384xf32>
    %291 = tpu.matmul %289, %290, %cst_65 {dimension_numbers = #tpu.dot_dimension_numbers<[1], [0], [0], [1], [0, 0, 1, 1], [], []>} : vector<64x16xbf16>, vector<16x384xbf16>, vector<64x384xf32> -> vector<64x384xf32>
    %c0_66 = arith.constant 0 : index
    %c0_67 = arith.constant 0 : index
    %292 = vector.load %arg4[%c0_66, %c0_67] : memref<1x384xf32, #tpu.memory_space<vmem>>, vector<1x384xf32>
    %293 = vector.broadcast %292 : vector<1x384xf32> to vector<64x384xf32>
    %294 = arith.addf %291, %293 : vector<64x384xf32>
    %c64_i32_68 = arith.constant 64 : i32
    %295 = arith.muli %288, %c64_i32_68 : i32
    %296 = tpu.assume_multiple %295, 8 : i32
    %297 = arith.index_cast %296 : i32 to index
    %c0_69 = arith.constant 0 : index
    %298 = vector.load %arg9[%297, %c0_69] : memref<128x384xf32, #tpu.memory_space<vmem>>, vector<64x384xf32>
    tpu.vector_store %arg9[%297, %c0_69], %294 {strides = array<i32>} : memref<128x384xf32, #tpu.memory_space<vmem>>, vector<64x384xf32>,
    %c1_i32_70 = arith.constant 1 : i32
    %299 = arith.cmpi sge, %arg0, %c1_i32_70 : i32
    %300 = arith.extui %299 : i1 to i32
    %c0_i32_71 = arith.constant 0 : i32
    %301 = arith.cmpi ne, %300, %c0_i32_71 : i32
    scf.if %301 {
      %c0_74 = arith.constant 0 : index
      %c0_75 = arith.constant 0 : index
      %305 = vector.load %arg10[%c0_74, %c0_75] : memref<8x128xf32, #tpu.memory_space<vmem>>, vector<8x128xf32>
      tpu.vector_store %arg10[%c0_74, %c0_75], %287 {strides = array<i32>} : memref<8x128xf32, #tpu.memory_space<vmem>>, vector<8x128xf32>,
    } else {
    }
    %c1_i32_72 = arith.constant 1 : i32
    %302 = arith.cmpi eq, %arg0, %c1_i32_72 : i32
    %303 = arith.extui %302 : i1 to i32
    %c0_i32_73 = arith.constant 0 : i32
    %304 = arith.cmpi ne, %303, %c0_i32_73 : i32
    scf.if %304 {
      %305 = arith.truncf %287 : vector<8x128xf32> to vector<8x128xbf16>
      %c0_74 = arith.constant 0 : index
      %c0_75 = arith.constant 0 : index
      %306 = vector.load %arg6[%c0_74, %c0_75] : memref<128x128xbf16, #tpu.memory_space<vmem>>, vector<128x128xbf16>
      %cst_76 = arith.constant dense<0.000000e+00> : vector<8x128xf32>
      %307 = tpu.matmul %305, %306, %cst_76 {dimension_numbers = #tpu.dot_dimension_numbers<[1], [0], [0], [1], [0, 0, 1, 1], [], []>} : vector<8x128xbf16>, vector<128x128xbf16>, vector<8x128xf32> -> vector<8x128xf32>
      %c0_77 = arith.constant 0 : index
      %c0_78 = arith.constant 0 : index
      %308 = vector.load %arg7[%c0_77, %c0_78] : memref<1x128xf32, #tpu.memory_space<vmem>>, vector<1x128xf32>
      %309 = vector.broadcast %308 : vector<1x128xf32> to vector<8x128xf32>
      %310 = arith.addf %307, %309 : vector<8x128xf32>
      %c0_79 = arith.constant 0 : index
      %c0_80 = arith.constant 0 : index
      %311 = vector.load %arg8[%c0_79, %c0_80] : memref<8x128xf32, #tpu.memory_space<vmem>>, vector<8x128xf32>
      tpu.vector_store %arg8[%c0_79, %c0_80], %310 {strides = array<i32>} : memref<8x128xf32, #tpu.memory_space<vmem>>, vector<8x128xf32>,
    } else {
    }
    return
  }
  func.func @transform_0(%arg0: i32) -> (i32, i32) {
    %c0_i32 = arith.constant 0 : i32
    %0 = arith.minsi %arg0, %c0_i32 : i32
    %c0_i32_0 = arith.constant 0 : i32
    %c0_i32_1 = arith.constant 0 : i32
    return %0, %c0_i32_0 : i32, i32
  }
  func.func @transform_1(%arg0: i32) -> (i32, i32) {
    %c0_i32 = arith.constant 0 : i32
    %c0_i32_0 = arith.constant 0 : i32
    %c0_i32_1 = arith.constant 0 : i32
    return %c0_i32, %c0_i32_0 : i32, i32
  }
  func.func @transform_2(%arg0: i32) -> (i32, i32) {
    %c0_i32 = arith.constant 0 : i32
    %c0_i32_0 = arith.constant 0 : i32
    %c0_i32_1 = arith.constant 0 : i32
    return %c0_i32, %c0_i32_0 : i32, i32
  }
  func.func @transform_3(%arg0: i32) -> (i32, i32) {
    %c0_i32 = arith.constant 0 : i32
    %c0_i32_0 = arith.constant 0 : i32
    %c0_i32_1 = arith.constant 0 : i32
    return %c0_i32, %c0_i32_0 : i32, i32
  }
  func.func @transform_4(%arg0: i32) -> (i32, i32) {
    %c0_i32 = arith.constant 0 : i32
    %c0_i32_0 = arith.constant 0 : i32
    %c0_i32_1 = arith.constant 0 : i32
    return %c0_i32, %c0_i32_0 : i32, i32
  }
  func.func @transform_5(%arg0: i32) -> (i32, i32) {
    %c0_i32 = arith.constant 0 : i32
    %c0_i32_0 = arith.constant 0 : i32
    %c0_i32_1 = arith.constant 0 : i32
    return %c0_i32, %c0_i32_0 : i32, i32
  }
  func.func @transform_6(%arg0: i32) -> (i32, i32) {
    %c0_i32 = arith.constant 0 : i32
    %c0_i32_0 = arith.constant 0 : i32
    %c0_i32_1 = arith.constant 0 : i32
    return %c0_i32, %c0_i32_0 : i32, i32
  }
  func.func @transform_7(%arg0: i32) -> (i32, i32) {
    %c0_i32 = arith.constant 0 : i32
    %c0_i32_0 = arith.constant 0 : i32
    %c0_i32_1 = arith.constant 0 : i32
    return %c0_i32, %c0_i32_0 : i32, i32
  }
}

</mosaic_0001>

<llo_original>
// kernel: tpu_custom_call.1
$region0: #{tpu_custom_call.1}
  #allocation0 [shape = 'u32[]', space=smem, size = 0x4, offset = 0x4, fixed_abs, tag = 'smem constant byte address 0x4 - core index']
  #allocation1 [shape = 'u32[72,128]{1,0:T(1,128)}', space=vmem, size = 0x9000, scoped, tag = 'internal scratch']
  #allocation2 [shape = 'f32[128,384]{1,0:T(8,128)}', space=vmem, size = 0x30000, scoped, tag = 'scratch operand']
  #allocation3 [shape = 'f32[8,128]{1,0:T(8,128)}', space=vmem, size = 0x1000, scoped, tag = 'scratch operand']
  %s0 = inlined_call_operand.vmem [shape: bf16[64,16], index: 0, kind: input, shape index: {}]
  %s1 = inlined_call_operand.vmem [shape: bf16[16,384], index: 1, kind: input, shape index: {}]
  %s2 = inlined_call_operand.hbm [shape: bf16[128,384], index: 2, kind: input, shape index: {}]
  %s3 = inlined_call_operand.vmem [shape: f32[1,384], index: 3, kind: input, shape index: {}]
  %s4 = inlined_call_operand.vmem [shape: f32[1,128], index: 4, kind: input, shape index: {}]
  %s5 = inlined_call_operand.hbm [shape: bf16[128,128], index: 5, kind: input, shape index: {}]
  %s6 = inlined_call_operand.vmem [shape: f32[1,128], index: 6, kind: input, shape index: {}]
  %s7 = inlined_call_operand.hbm [shape: f32[8,128], index: 7, kind: output, shape index: {}]
  %s8 = sld [smem:[#allocation0]]
  $region81: #{tpu_custom_call.1} parent=0
    _
  %s10 = ssub.s32 1, %s8
  %s11 = scalar_select 0, %s10, %s8
  $region1: #{tpu_custom_call.1} parent=0
    #allocation4 [shape = 'u8[98304]{0}', space=vmem, size = 0x18000, scoped, tag = 'input window, operand 2, single buffered']
    #allocation5 [shape = 's32[2]{0}', space=sflag, size = 0x8, scoped, tag = 'scoped memory for tpu_custom_call.1']
    #allocation6 [shape = 's32[2]{0}', space=sflag, size = 0x8, scoped, tag = 'scoped memory for tpu_custom_call.1']
    #allocation7 [shape = 'u8[32768]{0}', space=vmem, size = 0x8000, scoped, tag = 'input window, operand 5, single buffered']
    #allocation8 [shape = 's32[1]{0}', space=sflag, size = 0x4, scoped, tag = 'scoped memory for tpu_custom_call.1']
    #allocation9 [shape = 'u8[4096]{0}', space=vmem, size = 0x1000, scoped, tag = 'output window, operand 0, single buffered']
    %12 = vsyncpa [#allocation5], 0
    %13 = vsyncpa [#allocation8], 0
    %14 = vsyncpa [#allocation6], 0
    loop: start=0, step=1, limit=4
    $region2: #{tpu_custom_call.1} parent=1 // loop_pre_header
      _
    $region3: #{tpu_custom_call.1} parent=1 // loop_header
      %s16 = sphi 0, %s20
      %p17 = scmp.ge.s32.totalorder %s16, 4
      %s30 = sphi 0, %s32
      %s33 = sphi 0, %s30
      %s34 = sphi 0, %s33
      %s50 = sphi 0, %s34
      %s54 = sphi 0, %s54
      %s56 = sphi 0, %s54
      %s57 = sphi 0, %s56
      %s71 = sphi 0, %s57
      %s75 = sphi 0, %s75
      %s77 = sphi 0, %s75
      %s78 = sphi 0, %s77
      %s92 = sphi 0, %s78
      %s96 = sphi 0, %s96
      %s98 = sphi 0, %s96
      %s99 = sphi 0, %s98
      %s113 = sphi 0, %s99
      %s117 = sphi 0, %s117
      %s119 = sphi 0, %s117
      %s120 = sphi 0, %s119
      %s134 = sphi 0, %s120
      %s138 = sphi 0, %s138
      %s140 = sphi 0, %s138
      %s141 = sphi 0, %s140
      %s155 = sphi 0, %s141
      %s159 = sphi 0, %s159
      %s161 = sphi 0, %s159
      %s162 = sphi 0, %s161
      %s176 = sphi 0, %s162
      %s180 = sphi 0, %s180
      %s182 = sphi 0, %s180
      %s183 = sphi 0, %s182
      %s197 = sphi 0, %s183
    $region4: #{tpu_custom_call.1} parent=1 // loop_header_branch
      %19 = sbr.rel (%p17) target = $region8
    $region5: #{tpu_custom_call.1} parent=1 // loop_body
      %s21 = ssub.s32 %s16, 1
      %s22 = ssub.s32 %s16, 2
      %s23 = sadd.s32 %s16, 1
      %p24 = scmp.lt.s32.totalorder %s16, 0
      %s25 = scalar_select %p24, %s16, 0
      %p26 = scmp.lt.s32.totalorder %s23, 0
      %s27 = scalar_select %p26, %s23, 0
      %s28 = ssub.s32 %s25, %s27
      %p29 = scmp.eq.s32.totalorder %s28, 0
      %s31 = sadd.s32 %s30, 1
      %s32 = scalar_select %p29, %s30, %s31
      %p35 = pneg %p29
      %p36 = scmp.eq.s32.totalorder %s16, 1
      %p37 = por %p35, %p36
      %p38 = scmp.ne.s32.totalorder %s30, %s33
      %p39 = scmp.eq.s32.totalorder %s16, 0
      %p40 = por %p38, %p39
      %p41 = scmp.ne.s32.totalorder %s30, %s33
      %p42 = scmp.eq.s32.totalorder %s21, 1
      %p43 = por %p41, %p42
      %p44 = scmp.ne.s32.totalorder %s33, %s34
      %p45 = scmp.eq.s32.totalorder %s21, 0
      %p46 = por %p44, %p45
      %p47 = scmp.ne.s32.totalorder %s33, %s34
      %p48 = scmp.eq.s32.totalorder %s22, 1
      %p49 = por %p47, %p48
      %p51 = scmp.ne.s32.totalorder %s34, %s50
      %p52 = scmp.eq.s32.totalorder %s22, 0
      %p53 = por %p51, %p52
      %s55 = sadd.s32 %s54, 1
      %p58 = scmp.eq.s32.totalorder %s16, 1
      %p59 = scmp.ne.s32.totalorder %s54, %s56
      %p60 = scmp.eq.s32.totalorder %s16, 0
      %p61 = por %p59, %p60
      %p62 = scmp.ne.s32.totalorder %s54, %s56
      %p63 = scmp.eq.s32.totalorder %s21, 1
      %p64 = por %p62, %p63
      %p65 = scmp.ne.s32.totalorder %s56, %s57
      %p66 = scmp.eq.s32.totalorder %s21, 0
      %p67 = por %p65, %p66
      %p68 = scmp.ne.s32.totalorder %s56, %s57
      %p69 = scmp.eq.s32.totalorder %s22, 1
      %p70 = por %p68, %p69
      %p72 = scmp.ne.s32.totalorder %s57, %s71
      %p73 = scmp.eq.s32.totalorder %s22, 0
      %p74 = por %p72, %p73
      %s76 = sadd.s32 %s75, 1
      %p79 = scmp.eq.s32.totalorder %s16, 1
      %p80 = scmp.ne.s32.totalorder %s75, %s77
      %p81 = scmp.eq.s32.totalorder %s16, 0
      %p82 = por %p80, %p81
      %p83 = scmp.ne.s32.totalorder %s75, %s77
      %p84 = scmp.eq.s32.totalorder %s21, 1
      %p85 = por %p83, %p84
      %p86 = scmp.ne.s32.totalorder %s77, %s78
      %p87 = scmp.eq.s32.totalorder %s21, 0
      %p88 = por %p86, %p87
      %p89 = scmp.ne.s32.totalorder %s77, %s78
      %p90 = scmp.eq.s32.totalorder %s22, 1
      %p91 = por %p89, %p90
      %p93 = scmp.ne.s32.totalorder %s78, %s92
      %p94 = scmp.eq.s32.totalorder %s22, 0
      %p95 = por %p93, %p94
      %s97 = sadd.s32 %s96, 1
      %p100 = scmp.eq.s32.totalorder %s16, 1
      %p101 = scmp.ne.s32.totalorder %s96, %s98
      %p102 = scmp.eq.s32.totalorder %s16, 0
      %p103 = por %p101, %p102
      %p104 = scmp.ne.s32.totalorder %s96, %s98
      %p105 = scmp.eq.s32.totalorder %s21, 1
      %p106 = por %p104, %p105
      %p107 = scmp.ne.s32.totalorder %s98, %s99
      %p108 = scmp.eq.s32.totalorder %s21, 0
      %p109 = por %p107, %p108
      %p110 = scmp.ne.s32.totalorder %s98, %s99
      %p111 = scmp.eq.s32.totalorder %s22, 1
      %p112 = por %p110, %p111
      %p114 = scmp.ne.s32.totalorder %s99, %s113
      %p115 = scmp.eq.s32.totalorder %s22, 0
      %p116 = por %p114, %p115
      %s118 = sadd.s32 %s117, 1
      %p121 = scmp.eq.s32.totalorder %s16, 1
      %p122 = scmp.ne.s32.totalorder %s117, %s119
      %p123 = scmp.eq.s32.totalorder %s16, 0
      %p124 = por %p122, %p123
      %p125 = scmp.ne.s32.totalorder %s117, %s119
      %p126 = scmp.eq.s32.totalorder %s21, 1
      %p127 = por %p125, %p126
      %p128 = scmp.ne.s32.totalorder %s119, %s120
      %p129 = scmp.eq.s32.totalorder %s21, 0
      %p130 = por %p128, %p129
      %p131 = scmp.ne.s32.totalorder %s119, %s120
      %p132 = scmp.eq.s32.totalorder %s22, 1
      %p133 = por %p131, %p132
      %p135 = scmp.ne.s32.totalorder %s120, %s134
      %p136 = scmp.eq.s32.totalorder %s22, 0
      %p137 = por %p135, %p136
      %s139 = sadd.s32 %s138, 1
      %p142 = scmp.eq.s32.totalorder %s16, 1
      %p143 = scmp.ne.s32.totalorder %s138, %s140
      %p144 = scmp.eq.s32.totalorder %s16, 0
      %p145 = por %p143, %p144
      %p146 = scmp.ne.s32.totalorder %s138, %s140
      %p147 = scmp.eq.s32.totalorder %s21, 1
      %p148 = por %p146, %p147
      %p149 = scmp.ne.s32.totalorder %s140, %s141
      %p150 = scmp.eq.s32.totalorder %s21, 0
      %p151 = por %p149, %p150
      %p152 = scmp.ne.s32.totalorder %s140, %s141
      %p153 = scmp.eq.s32.totalorder %s22, 1
      %p154 = por %p152, %p153
      %p156 = scmp.ne.s32.totalorder %s141, %s155
      %p157 = scmp.eq.s32.totalorder %s22, 0
      %p158 = por %p156, %p157
      %s160 = sadd.s32 %s159, 1
      %p163 = scmp.eq.s32.totalorder %s16, 1
      %p164 = scmp.ne.s32.totalorder %s159, %s161
      %p165 = scmp.eq.s32.totalorder %s16, 0
      %p166 = por %p164, %p165
      %p167 = scmp.ne.s32.totalorder %s159, %s161
      %p168 = scmp.eq.s32.totalorder %s21, 1
      %p169 = por %p167, %p168
      %p170 = scmp.ne.s32.totalorder %s161, %s162
      %p171 = scmp.eq.s32.totalorder %s21, 0
      %p172 = por %p170, %p171
      %p173 = scmp.ne.s32.totalorder %s161, %s162
      %p174 = scmp.eq.s32.totalorder %s22, 1
      %p175 = por %p173, %p174
      %p177 = scmp.ne.s32.totalorder %s162, %s176
      %p178 = scmp.eq.s32.totalorder %s22, 0
      %p179 = por %p177, %p178
      %s181 = sadd.s32 %s180, 1
      %p184 = scmp.eq.s32.totalorder %s16, 1
      %p185 = scmp.ne.s32.totalorder %s180, %s182
      %p186 = scmp.eq.s32.totalorder %s16, 0
      %p187 = por %p185, %p186
      %p188 = scmp.ne.s32.totalorder %s180, %s182
      %p189 = scmp.eq.s32.totalorder %s21, 1
      %p190 = por %p188, %p189
      %p191 = scmp.ne.s32.totalorder %s182, %s183
      %p192 = scmp.eq.s32.totalorder %s21, 0
      %p193 = por %p191, %p192
      %p194 = scmp.ne.s32.totalorder %s182, %s183
      %p195 = scmp.eq.s32.totalorder %s22, 1
      %p196 = por %p194, %p195
      %p198 = scmp.ne.s32.totalorder %s183, %s197
      %p199 = scmp.eq.s32.totalorder %s22, 0
      %p200 = por %p198, %p199
      %p201 = scmp.le.s32.totalorder 1, %s16
      %p202 = scmp.lt.s32.totalorder %s16, 3
      %p203 = pnand %p201, %p202
      %p204 = pneg %p203
      // Predicated region
      $region9: #{tpu_custom_call.1} parent=5 // pred_check
        _
      $region10: #{tpu_custom_call.1} parent=5 // pred_check_branch
        %206 = sbr.rel (%p203) target = $region12
      $region11: #{tpu_custom_call.1} parent=5 // pred_region
        %s207 = ssub.s32 %s16, 1
        // Predicated region
        $region13: #{tpu_custom_call.1} parent=11 // pred_check
          %p208 = pneg %p67
        $region14: #{tpu_custom_call.1} parent=11 // pred_check_branch
          %210 = sbr.rel (%p208) target = $region16
        $region15: #{tpu_custom_call.1} parent=11 // pred_region
          _
        $region16: #{tpu_custom_call.1} parent=11 // pred_fallthru
          _
        // Predicated region
        $region17: #{tpu_custom_call.1} parent=11 // pred_check
          %p211 = pneg %p88
        $region18: #{tpu_custom_call.1} parent=11 // pred_check_branch
          %213 = sbr.rel (%p211) target = $region20
        $region19: #{tpu_custom_call.1} parent=11 // pred_region
          %215 = vsyncadd [#allocation5], 0
          %s216 = sshll.u32 %s2, 4
          %s217 = int_to_ptr.hbm [resolvable:$true] %s216
          %s218 = sshll.u32 [#allocation4], 4
          %s219 = int_to_ptr.vmem [resolvable:$true] %s218
          %224 = dma.hbm_to_vmem [thread:$0]  %s217, 3072, %s219, [#allocation5], 192, 192, 12
        $region20: #{tpu_custom_call.1} parent=11 // pred_fallthru
          _
        // Predicated region
        $region21: #{tpu_custom_call.1} parent=11 // pred_check
          %p225 = pneg %p109
        $region22: #{tpu_custom_call.1} parent=11 // pred_check_branch
          %227 = sbr.rel (%p225) target = $region24
        $region23: #{tpu_custom_call.1} parent=11 // pred_region
          _
        $region24: #{tpu_custom_call.1} parent=11 // pred_fallthru
          _
        // Predicated region
        $region25: #{tpu_custom_call.1} parent=11 // pred_check
          %p228 = pneg %p130
        $region26: #{tpu_custom_call.1} parent=11 // pred_check_branch
          %230 = sbr.rel (%p228) target = $region28
        $region27: #{tpu_custom_call.1} parent=11 // pred_region
          _
        $region28: #{tpu_custom_call.1} parent=11 // pred_fallthru
          _
        // Predicated region
        $region29: #{tpu_custom_call.1} parent=11 // pred_check
          %p231 = pneg %p151
        $region30: #{tpu_custom_call.1} parent=11 // pred_check_branch
          %233 = sbr.rel (%p231) target = $region32
        $region31: #{tpu_custom_call.1} parent=11 // pred_region
          %235 = vsyncadd [#allocation8], 0
          %s236 = sshll.u32 %s5, 4
          %s237 = int_to_ptr.hbm [resolvable:$true] %s236
          %s238 = sshll.u32 [#allocation7], 4
          %s239 = int_to_ptr.vmem [resolvable:$true] %s238
          %244 = dma.hbm_to_vmem [thread:$0]  %s237, 1024, %s239, [#allocation8], 64, 64, 4
        $region32: #{tpu_custom_call.1} parent=11 // pred_fallthru
          _
        // Predicated region
        $region33: #{tpu_custom_call.1} parent=11 // pred_check
          %p245 = pneg %p172
        $region34: #{tpu_custom_call.1} parent=11 // pred_check_branch
          %247 = sbr.rel (%p245) target = $region36
        $region35: #{tpu_custom_call.1} parent=11 // pred_region
          _
        $region36: #{tpu_custom_call.1} parent=11 // pred_fallthru
          _
      $region12: #{tpu_custom_call.1} parent=5 // pred_fallthru
        _
      %p248 = scmp.lt.s32.totalorder %s16, 2
      // Predicated region
      $region37: #{tpu_custom_call.1} parent=5 // pred_check
        %p249 = pneg %p248
      $region38: #{tpu_custom_call.1} parent=5 // pred_check_branch
        %251 = sbr.rel (%p249) target = $region40
      $region39: #{tpu_custom_call.1} parent=5 // pred_region
        // Predicated region
        $region41: #{tpu_custom_call.1} parent=39 // pred_check
          %p252 = pneg %p40
        $region42: #{tpu_custom_call.1} parent=39 // pred_check_branch
          %254 = sbr.rel (%p252) target = $region44
        $region43: #{tpu_custom_call.1} parent=39 // pred_region
          %p255 = scmp.lt.s32.totalorder %s16, 0
          %s256 = scalar_select %p255, %s16, 0
          %s257 = smul.u32 8, %s256
          %p258 = scmp.lt.s32.totalorder %s257, 7
          %s259 = scalar_select %p258, %s257, 7
          %s260 = smul.addr %s259, 4
          %s261 = scalar_lea.vmem %s0, %s260
          %p262 = scmp.lt.s32.totalorder %s16, 0
          %s263 = scalar_select %p262, %s16, 0
          %s264 = smul.u32 8, %s263
        $region44: #{tpu_custom_call.1} parent=39 // pred_fallthru
          _
      $region40: #{tpu_custom_call.1} parent=5 // pred_fallthru
        _
      %p265 = scmp.le.s32.totalorder 1, %s16
      %p266 = scmp.lt.s32.totalorder %s16, 3
      %p267 = pnand %p265, %p266
      %p268 = pneg %p267
      // Predicated region
      $region45: #{tpu_custom_call.1} parent=5 // pred_check
        _
      $region46: #{tpu_custom_call.1} parent=5 // pred_check_branch
        %270 = sbr.rel (%p267) target = $region48
      $region47: #{tpu_custom_call.1} parent=5 // pred_region
        %s271 = ssub.s32 %s16, 1
        // Predicated region
        $region49: #{tpu_custom_call.1} parent=47 // pred_check
          %p272 = pneg %p88
        $region50: #{tpu_custom_call.1} parent=47 // pred_check_branch
          %274 = sbr.rel (%p272) target = $region52
        $region51: #{tpu_custom_call.1} parent=47 // pred_region
          %276 = dma.done [#allocation5], 3072
        $region52: #{tpu_custom_call.1} parent=47 // pred_fallthru
          _
        // Predicated region
        $region53: #{tpu_custom_call.1} parent=47 // pred_check
          %p277 = pneg %p151
        $region54: #{tpu_custom_call.1} parent=47 // pred_check_branch
          %279 = sbr.rel (%p277) target = $region56
        $region55: #{tpu_custom_call.1} parent=47 // pred_region
          %281 = dma.done [#allocation8], 1024
        $region56: #{tpu_custom_call.1} parent=47 // pred_fallthru
          _
        %p282 = scmp.lt.s32.totalorder %s21, 0
        %s283 = scalar_select %p282, %s21, 0
        %s284 = smul.u32 8, %s283
        %p285 = scmp.lt.s32.totalorder %s284, 7
        %s286 = scalar_select %p285, %s284, 7
        %s287 = smul.addr %s286, 4
        %s288 = scalar_lea.vmem %s0, %s287
        %p289 = pneg %p46
        %p290 = pneg %p43
        %p291 = pneg %p67
        %p292 = pneg %p64
        %p293 = pneg %p88
        %p294 = pneg %p85
        %p295 = pneg %p109
        %p296 = pneg %p106
        %p297 = pneg %p130
        %p298 = pneg %p127
        %p299 = pneg %p151
        %p300 = pneg %p148
        %p301 = pneg %p172
        %p302 = pneg %p169
        %p303 = pneg %p193
        %p304 = pneg %p190
        %p305 = scmp.lt.s32.totalorder %s21, 0
        %s306 = scalar_select %p305, %s21, 0
        %s307 = smul.u32 8, %s306
        %p308 = scmp.lt.s32.totalorder %s307, 7
        %s309 = scalar_select %p308, %s307, 7
        %s310 = smul.addr %s309, 4
        %s311 = scalar_lea.vmem %s0, %s310
        %p312 = scmp.lt.s32.totalorder %s21, 0
        %s313 = scalar_select %p312, %s21, 0
        %s314 = smul.u32 8, %s313
        %p316 = scmp.eq.s32.totalorder %s21, 0
        // Predicated region
        $region57: #{tpu_custom_call.1} parent=47 // pred_check
          %p317 = pneg %p316
        $region58: #{tpu_custom_call.1} parent=47 // pred_check_branch
          %319 = sbr.rel (%p317) target = $region60
        $region59: #{tpu_custom_call.1} parent=47 // pred_region
          %320 = vst [vmem:[#allocation3] sm:$0xff] 0.0
        $region60: #{tpu_custom_call.1} parent=47 // pred_fallthru
          _
        %s321 = sadd.s32 %s21, 1
        %p322 = scmp.lt.s32.totalorder %s321, 0
        %s323 = ssub.s32 0, %s321
        %s324 = scalar_select %p322, %s323, %s321
        %s325 = sand.u32 %s324, 1
        %s326 = ssub.s32 0, %s325
        %s327 = scalar_select %p322, %s326, %s325
        %s328 = smul.u32 %s327, 64
        %v329 = vld [vmem:[%s4] sm:$0x1]
        %v330 = vld [vmem:[#allocation3] sm:$0xff]
        %s331 = sshra.s32 %s328, 3
        %s332 = sand.u32 %s328, 7
        %s333 = smul.u32 %s331, 3
        %s334 = smul.addr %s333, 8
        %s335 = scalar_lea.vmem [#allocation2], %s334
        %v336 = vld [vmem:[%s335] sm:$0xff]
        %v337 = vld [vmem:[%s335 + $0x8] sm:$0xff]
        %v338 = vld [vmem:[%s335 + $0x10] sm:$0xff]
        %v339 = vpack.c.bf16 %v330, %v330
        %v340 = vld [vmem:[#allocation4] sm:$0xff]
        %v341 = vld [vmem:[#allocation4 + $0x8] sm:$0xf]
        %v342 = vld [vmem:[#allocation4 + $0xc] sm:$0xff]
        %v343 = vld [vmem:[#allocation4 + $0x14] sm:$0xf]
        %v344 = vld [vmem:[#allocation4 + $0x18] sm:$0xff]
        %v345 = vld [vmem:[#allocation4 + $0x20] sm:$0xf]
        %v346 = vld [vmem:[#allocation4 + $0x24] sm:$0xff]
        %v347 = vld [vmem:[#allocation4 + $0x2c] sm:$0xf]
        %v348 = vld [vmem:[#allocation4 + $0x30] sm:$0xff]
        %v349 = vld [vmem:[#allocation4 + $0x38] sm:$0xf]
        %v350 = vld [vmem:[#allocation4 + $0x3c] sm:$0xff]
        %v351 = vld [vmem:[#allocation4 + $0x44] sm:$0xf]
        %v352 = vld [vmem:[#allocation4 + $0x48] sm:$0xff]
        %v353 = vld [vmem:[#allocation4 + $0x50] sm:$0xf]
        %v354 = vld [vmem:[#allocation4 + $0x54] sm:$0xff]
        %v355 = vld [vmem:[#allocation4 + $0x5c] sm:$0xf]
        %v356 = vld [vmem:[#allocation4 + $0x60] sm:$0xff]
        %v357 = vld [vmem:[#allocation4 + $0x68] sm:$0xf]
        %v358 = vld [vmem:[#allocation4 + $0x6c] sm:$0xff]
        %v359 = vld [vmem:[#allocation4 + $0x74] sm:$0xf]
        %v360 = vld [vmem:[#allocation4 + $0x78] sm:$0xff]
        %v361 = vld [vmem:[#allocation4 + $0x80] sm:$0xf]
        %v362 = vld [vmem:[#allocation4 + $0x84] sm:$0xff]
        %v363 = vld [vmem:[#allocation4 + $0x8c] sm:$0xf]
        %v364 = vld [vmem:[#allocation4 + $0x90] sm:$0xff]
        %v365 = vld [vmem:[#allocation4 + $0x98] sm:$0xf]
        %v366 = vld [vmem:[#allocation4 + $0x9c] sm:$0xff]
        %v367 = vld [vmem:[#allocation4 + $0xa4] sm:$0xf]
        %v368 = vld [vmem:[#allocation4 + $0xa8] sm:$0xff]
        %v369 = vld [vmem:[#allocation4 + $0xb0] sm:$0xf]
        %v370 = vld [vmem:[#allocation4 + $0xb4] sm:$0xff]
        %v371 = vld [vmem:[#allocation4 + $0xbc] sm:$0xf]
        %v404 = vunpack.c.l.b16 %v340
        %v405 = vunpack.c.h.b16 %v340
        %v406 = vunpack.c.l.b16 %v341
        %v407 = vunpack.c.l.b16 %v342
        %v408 = vunpack.c.h.b16 %v342
        %v409 = vunpack.c.l.b16 %v343
        %v410 = vunpack.c.l.b16 %v344
        %v411 = vunpack.c.h.b16 %v344
        %v412 = vunpack.c.l.b16 %v345
        %v413 = vunpack.c.l.b16 %v346
        %v414 = vunpack.c.h.b16 %v346
        %v415 = vunpack.c.l.b16 %v347
        %v416 = vunpack.c.l.b16 %v348
        %v417 = vunpack.c.h.b16 %v348
        %v418 = vunpack.c.l.b16 %v349
        %v419 = vunpack.c.l.b16 %v350
        %v420 = vunpack.c.h.b16 %v350
        %v421 = vunpack.c.l.b16 %v351
        %v422 = vunpack.c.l.b16 %v352
        %v423 = vunpack.c.h.b16 %v352
        %v424 = vunpack.c.l.b16 %v353
        %v425 = vunpack.c.l.b16 %v354
        %v426 = vunpack.c.h.b16 %v354
        %v427 = vunpack.c.l.b16 %v355
        %v428 = vunpack.c.l.b16 %v356
        %v429 = vunpack.c.h.b16 %v356
        %v430 = vunpack.c.l.b16 %v357
        %v431 = vunpack.c.l.b16 %v358
        %v432 = vunpack.c.h.b16 %v358
        %v433 = vunpack.c.l.b16 %v359
        %v434 = vunpack.c.l.b16 %v360
        %v435 = vunpack.c.h.b16 %v360
        %v436 = vunpack.c.l.b16 %v361
        %v437 = vunpack.c.l.b16 %v362
        %v438 = vunpack.c.h.b16 %v362
        %v439 = vunpack.c.l.b16 %v363
        %v440 = vunpack.c.l.b16 %v364
        %v441 = vunpack.c.h.b16 %v364
        %v442 = vunpack.c.l.b16 %v365
        %v443 = vunpack.c.l.b16 %v366
        %v444 = vunpack.c.h.b16 %v366
        %v445 = vunpack.c.l.b16 %v367
        %v446 = vunpack.c.l.b16 %v368
        %v447 = vunpack.c.h.b16 %v368
        %v448 = vunpack.c.l.b16 %v369
        %v449 = vunpack.c.l.b16 %v370
        %v450 = vunpack.c.h.b16 %v370
        %v451 = vunpack.c.l.b16 %v371
        %v452 = vpack.c.b16 %v407, %v404
        %v453 = vpack.c.b16 %v408, %v405
        %v454 = vpack.c.b16 %v409, %v406
        %v455 = vpack.c.b16 %v413, %v410
        %v456 = vpack.c.b16 %v414, %v411
        %v457 = vpack.c.b16 %v415, %v412
        %v458 = vpack.c.b16 %v419, %v416
        %v459 = vpack.c.b16 %v420, %v417
        %v460 = vpack.c.b16 %v421, %v418
        %v461 = vpack.c.b16 %v425, %v422
        %v462 = vpack.c.b16 %v426, %v423
        %v463 = vpack.c.b16 %v427, %v424
        %v464 = vpack.c.b16 %v431, %v428
        %v465 = vpack.c.b16 %v432, %v429
        %v466 = vpack.c.b16 %v433, %v430
        %v467 = vpack.c.b16 %v437, %v434
        %v468 = vpack.c.b16 %v438, %v435
        %v469 = vpack.c.b16 %v439, %v436
        %v470 = vpack.c.b16 %v443, %v440
        %v471 = vpack.c.b16 %v444, %v441
        %v472 = vpack.c.b16 %v445, %v442
        %v473 = vpack.c.b16 %v449, %v446
        %v474 = vpack.c.b16 %v450, %v447
        %v475 = vpack.c.b16 %v451, %v448
        %500 = vmatpush.bf16.msra.mxu0 %v473
        %501 = vmatpush.bf16.msra.mxu0 %v470
        %502 = vmatpush.bf16.msra.mxu0 %v467
        %503 = vmatpush.bf16.msra.mxu0 %v464
        %504 = vmatpush.bf16.msra.mxu0 %v461
        %505 = vmatpush.bf16.msra.mxu0 %v458
        %506 = vmatpush.bf16.msra.mxu0 %v455
        %507 = vmatpush.bf16.msra.mxu0 %v452
        %508 = vmatmul.bf16.gmra.mxu0 %v339
        %v509 = vpop.f32.mrf.mxu0
        %v510 = vadd.f32 0.0, %v509
        %v511 = vpop.f32.mrf.mxu0
        %512 = vdwg.mxu0
        %513 = vmatpush.bf16.msra.mxu0 %v474
        %514 = vmatpush.bf16.msra.mxu0 %v471
        %515 = vmatpush.bf16.msra.mxu0 %v468
        %516 = vmatpush.bf16.msra.mxu0 %v465
        %517 = vmatpush.bf16.msra.mxu0 %v462
        %518 = vmatpush.bf16.msra.mxu0 %v459
        %519 = vmatpush.bf16.msra.mxu0 %v456
        %520 = vmatpush.bf16.msra.mxu0 %v453
        %521 = vmatmul.bf16.gmra.mxu0 %v339
        %v522 = vpop.f32.mrf.mxu0
        %v523 = vadd.f32 0.0, %v522
        %v524 = vpop.f32.mrf.mxu0
        %525 = vdwg.mxu0
        %526 = vmatpush.bf16.msra.mxu0 %v475
        %527 = vmatpush.bf16.msra.mxu0 %v472
        %528 = vmatpush.bf16.msra.mxu0 %v469
        %529 = vmatpush.bf16.msra.mxu0 %v466
        %530 = vmatpush.bf16.msra.mxu0 %v463
        %531 = vmatpush.bf16.msra.mxu0 %v460
        %532 = vmatpush.bf16.msra.mxu0 %v457
        %533 = vmatpush.bf16.msra.mxu0 %v454
        %534 = vmatmul.bf16.gmra.mxu0 %v339
        %v535 = vpop.f32.mrf.mxu0
        %v536 = vadd.f32 0.0, %v535
        %v537 = vpop.f32.mrf.mxu0
        %538 = vdwg.mxu0
        %v539 = vadd.f32 %v336, %v510
        %v540 = vxor.u32 %v539, 2147483648
        %v541 = vmul.f32 %v540, 1.442695
        %v542 = vpow.pop %v541
        %v543 = vadd.f32 %v542, 1.0
        %v544 = vrcp.pop %v543
        %v545 = vmul.f32 %v543, %v544
        %v546 = vsub.f32 1.0, %v545
        %v547 = vmul.f32 %v544, %v546
        %v548 = vadd.f32 %v544, %v547
        %vm549 = vweird.f32 %v543
        %vm550 = vweird.f32 %v544
        %vm551 = vmor %vm549, %vm550
        %v552 = vsel %vm551, %v544, %v548
        %v553 = vand.u32 2147483647, %v543
        %vm554 = vcmp.eq.f32.partialorder %v553, 8.507059e+37
        %v555 = vand.u32 %v543, 2147483648
        %v556 = vor.u32 1.1754944e-38, %v555
        %v557 = vsel %vm554, %v556, %v552
        %v558 = vmul.f32 1.0, %v557
        %v559 = vadd.f32 %v337, %v523
        %v560 = vxor.u32 %v559, 2147483648
        %v561 = vmul.f32 %v560, 1.442695
        %v562 = vpow.pop %v561
        %v563 = vadd.f32 %v562, 1.0
        %v564 = vrcp.pop %v563
        %v565 = vmul.f32 %v563, %v564
        %v566 = vsub.f32 1.0, %v565
        %v567 = vmul.f32 %v564, %v566
        %v568 = vadd.f32 %v564, %v567
        %vm569 = vweird.f32 %v563
        %vm570 = vweird.f32 %v564
        %vm571 = vmor %vm569, %vm570
        %v572 = vsel %vm571, %v564, %v568
        %v573 = vand.u32 2147483647, %v563
        %vm574 = vcmp.eq.f32.partialorder %v573, 8.507059e+37
        %v575 = vand.u32 %v563, 2147483648
        %v576 = vor.u32 1.1754944e-38, %v575
        %v577 = vsel %vm574, %v576, %v572
        %v578 = vmul.f32 1.0, %v577
        %v580 = vperm.slane %v329, 0
        %v582 = vadd.f32 %v536, %v580
        %v583 = vmul.f32 %v558, %v582
        %v584 = vadd.f32 %v338, %v583
        %v585 = vtanh.pop %v584
        %v586 = vsub.f32 1.0, %v578
        %v587 = vmul.f32 %v586, %v585
        %v588 = vmul.f32 %v578, %v330
        %v589 = vadd.f32 %v587, %v588
        %s590 = sadd.s32 %s328, 8
        %s591 = sshra.s32 %s590, 3
        %s592 = sand.u32 %s590, 7
        %s593 = smul.u32 %s591, 3
        %s594 = smul.addr %s593, 8
        %s595 = scalar_lea.vmem [#allocation2], %s594
        %v596 = vld [vmem:[%s595] sm:$0xff]
        %v597 = vld [vmem:[%s595 + $0x8] sm:$0xff]
        %v598 = vld [vmem:[%s595 + $0x10] sm:$0xff]
        %v599 = vpack.c.bf16 %v589, %v589
        %600 = vmatpush.bf16.msra.mxu0 %v473
        %601 = vmatpush.bf16.msra.mxu0 %v470
        %602 = vmatpush.bf16.msra.mxu0 %v467
        %603 = vmatpush.bf16.msra.mxu0 %v464
        %604 = vmatpush.bf16.msra.mxu0 %v461
        %605 = vmatpush.bf16.msra.mxu0 %v458
        %606 = vmatpush.bf16.msra.mxu0 %v455
        %607 = vmatpush.bf16.msra.mxu0 %v452
        %608 = vmatmul.bf16.gmra.mxu0 %v599
        %v609 = vpop.f32.mrf.mxu0
        %v610 = vadd.f32 0.0, %v609
        %v611 = vpop.f32.mrf.mxu0
        %612 = vdwg.mxu0
        %613 = vmatpush.bf16.msra.mxu0 %v474
        %614 = vmatpush.bf16.msra.mxu0 %v471
        %615 = vmatpush.bf16.msra.mxu0 %v468
        %616 = vmatpush.bf16.msra.mxu0 %v465
        %617 = vmatpush.bf16.msra.mxu0 %v462
        %618 = vmatpush.bf16.msra.mxu0 %v459
        %619 = vmatpush.bf16.msra.mxu0 %v456
        %620 = vmatpush.bf16.msra.mxu0 %v453
        %621 = vmatmul.bf16.gmra.mxu0 %v599
        %v622 = vpop.f32.mrf.mxu0
        %v623 = vadd.f32 0.0, %v622
        %v624 = vpop.f32.mrf.mxu0
        %625 = vdwg.mxu0
        %626 = vmatpush.bf16.msra.mxu0 %v475
        %627 = vmatpush.bf16.msra.mxu0 %v472
        %628 = vmatpush.bf16.msra.mxu0 %v469
        %629 = vmatpush.bf16.msra.mxu0 %v466
        %630 = vmatpush.bf16.msra.mxu0 %v463
        %631 = vmatpush.bf16.msra.mxu0 %v460
        %632 = vmatpush.bf16.msra.mxu0 %v457
        %633 = vmatpush.bf16.msra.mxu0 %v454
        %634 = vmatmul.bf16.gmra.mxu0 %v599
        %v635 = vpop.f32.mrf.mxu0
        %v636 = vadd.f32 0.0, %v635
        %v637 = vpop.f32.mrf.mxu0
        %638 = vdwg.mxu0
        %v639 = vadd.f32 %v596, %v610
        %v640 = vxor.u32 %v639, 2147483648
        %v641 = vmul.f32 %v640, 1.442695
        %v642 = vpow.pop %v641
        %v643 = vadd.f32 %v642, 1.0
        %v644 = vrcp.pop %v643
        %v645 = vmul.f32 %v643, %v644
        %v646 = vsub.f32 1.0, %v645
        %v647 = vmul.f32 %v644, %v646
        %v648 = vadd.f32 %v644, %v647
        %vm649 = vweird.f32 %v643
        %vm650 = vweird.f32 %v644
        %vm651 = vmor %vm649, %vm650
        %v652 = vsel %vm651, %v644, %v648
        %v653 = vand.u32 2147483647, %v643
        %vm654 = vcmp.eq.f32.partialorder %v653, 8.507059e+37
        %v655 = vand.u32 %v643, 2147483648
        %v656 = vor.u32 1.1754944e-38, %v655
        %v657 = vsel %vm654, %v656, %v652
        %v658 = vmul.f32 1.0, %v657
        %v659 = vadd.f32 %v597, %v623
        %v660 = vxor.u32 %v659, 2147483648
        %v661 = vmul.f32 %v660, 1.442695
        %v662 = vpow.pop %v661
        %v663 = vadd.f32 %v662, 1.0
        %v664 = vrcp.pop %v663
        %v665 = vmul.f32 %v663, %v664
        %v666 = vsub.f32 1.0, %v665
        %v667 = vmul.f32 %v664, %v666
        %v668 = vadd.f32 %v664, %v667
        %vm669 = vweird.f32 %v663
        %vm670 = vweird.f32 %v664
        %vm671 = vmor %vm669, %vm670
        %v672 = vsel %vm671, %v664, %v668
        %v673 = vand.u32 2147483647, %v663
        %vm674 = vcmp.eq.f32.partialorder %v673, 8.507059e+37
        %v675 = vand.u32 %v663, 2147483648
        %v676 = vor.u32 1.1754944e-38, %v675
        %v677 = vsel %vm674, %v676, %v672
        %v678 = vmul.f32 1.0, %v677
        %v679 = vadd.f32 %v636, %v580
        %v680 = vmul.f32 %v658, %v679
        %v681 = vadd.f32 %v598, %v680
        %v682 = vtanh.pop %v681
        %v683 = vsub.f32 1.0, %v678
        %v684 = vmul.f32 %v683, %v682
        %v685 = vmul.f32 %v678, %v589
        %v686 = vadd.f32 %v684, %v685
        %s687 = sadd.s32 %s328, 16
        %s688 = sshra.s32 %s687, 3
        %s689 = sand.u32 %s687, 7
        %s690 = smul.u32 %s688, 3
        %s691 = smul.addr %s690, 8
        %s692 = scalar_lea.vmem [#allocation2], %s691
        %v693 = vld [vmem:[%s692] sm:$0xff]
        %v694 = vld [vmem:[%s692 + $0x8] sm:$0xff]
        %v695 = vld [vmem:[%s692 + $0x10] sm:$0xff]
        %v696 = vpack.c.bf16 %v686, %v686
        %697 = vmatpush.bf16.msra.mxu0 %v473
        %698 = vmatpush.bf16.msra.mxu0 %v470
        %699 = vmatpush.bf16.msra.mxu0 %v467
        %700 = vmatpush.bf16.msra.mxu0 %v464
        %701 = vmatpush.bf16.msra.mxu0 %v461
        %702 = vmatpush.bf16.msra.mxu0 %v458
        %703 = vmatpush.bf16.msra.mxu0 %v455
        %704 = vmatpush.bf16.msra.mxu0 %v452
        %705 = vmatmul.bf16.gmra.mxu0 %v696
        %v706 = vpop.f32.mrf.mxu0
        %v707 = vadd.f32 0.0, %v706
        %v708 = vpop.f32.mrf.mxu0
        %709 = vdwg.mxu0
        %710 = vmatpush.bf16.msra.mxu0 %v474
        %711 = vmatpush.bf16.msra.mxu0 %v471
        %712 = vmatpush.bf16.msra.mxu0 %v468
        %713 = vmatpush.bf16.msra.mxu0 %v465
        %714 = vmatpush.bf16.msra.mxu0 %v462
        %715 = vmatpush.bf16.msra.mxu0 %v459
        %716 = vmatpush.bf16.msra.mxu0 %v456
        %717 = vmatpush.bf16.msra.mxu0 %v453
        %718 = vmatmul.bf16.gmra.mxu0 %v696
        %v719 = vpop.f32.mrf.mxu0
        %v720 = vadd.f32 0.0, %v719
        %v721 = vpop.f32.mrf.mxu0
        %722 = vdwg.mxu0
        %723 = vmatpush.bf16.msra.mxu0 %v475
        %724 = vmatpush.bf16.msra.mxu0 %v472
        %725 = vmatpush.bf16.msra.mxu0 %v469
        %726 = vmatpush.bf16.msra.mxu0 %v466
        %727 = vmatpush.bf16.msra.mxu0 %v463
        %728 = vmatpush.bf16.msra.mxu0 %v460
        %729 = vmatpush.bf16.msra.mxu0 %v457
        %730 = vmatpush.bf16.msra.mxu0 %v454
        %731 = vmatmul.bf16.gmra.mxu0 %v696
        %v732 = vpop.f32.mrf.mxu0
        %v733 = vadd.f32 0.0, %v732
        %v734 = vpop.f32.mrf.mxu0
        %735 = vdwg.mxu0
        %v736 = vadd.f32 %v693, %v707
        %v737 = vxor.u32 %v736, 2147483648
        %v738 = vmul.f32 %v737, 1.442695
        %v739 = vpow.pop %v738
        %v740 = vadd.f32 %v739, 1.0
        %v741 = vrcp.pop %v740
        %v742 = vmul.f32 %v740, %v741
        %v743 = vsub.f32 1.0, %v742
        %v744 = vmul.f32 %v741, %v743
        %v745 = vadd.f32 %v741, %v744
        %vm746 = vweird.f32 %v740
        %vm747 = vweird.f32 %v741
        %vm748 = vmor %vm746, %vm747
        %v749 = vsel %vm748, %v741, %v745
        %v750 = vand.u32 2147483647, %v740
        %vm751 = vcmp.eq.f32.partialorder %v750, 8.507059e+37
        %v752 = vand.u32 %v740, 2147483648
        %v753 = vor.u32 1.1754944e-38, %v752
        %v754 = vsel %vm751, %v753, %v749
        %v755 = vmul.f32 1.0, %v754
        %v756 = vadd.f32 %v694, %v720
        %v757 = vxor.u32 %v756, 2147483648
        %v758 = vmul.f32 %v757, 1.442695
        %v759 = vpow.pop %v758
        %v760 = vadd.f32 %v759, 1.0
        %v761 = vrcp.pop %v760
        %v762 = vmul.f32 %v760, %v761
        %v763 = vsub.f32 1.0, %v762
        %v764 = vmul.f32 %v761, %v763
        %v765 = vadd.f32 %v761, %v764
        %vm766 = vweird.f32 %v760
        %vm767 = vweird.f32 %v761
        %vm768 = vmor %vm766, %vm767
        %v769 = vsel %vm768, %v761, %v765
        %v770 = vand.u32 2147483647, %v760
        %vm771 = vcmp.eq.f32.partialorder %v770, 8.507059e+37
        %v772 = vand.u32 %v760, 2147483648
        %v773 = vor.u32 1.1754944e-38, %v772
        %v774 = vsel %vm771, %v773, %v769
        %v775 = vmul.f32 1.0, %v774
        %v776 = vadd.f32 %v733, %v580
        %v777 = vmul.f32 %v755, %v776
        %v778 = vadd.f32 %v695, %v777
        %v779 = vtanh.pop %v778
        %v780 = vsub.f32 1.0, %v775
        %v781 = vmul.f32 %v780, %v779
        %v782 = vmul.f32 %v775, %v686
        %v783 = vadd.f32 %v781, %v782
        %s784 = sadd.s32 %s328, 24
        %s785 = sshra.s32 %s784, 3
        %s786 = sand.u32 %s784, 7
        %s787 = smul.u32 %s785, 3
        %s788 = smul.addr %s787, 8
        %s789 = scalar_lea.vmem [#allocation2], %s788
        %v790 = vld [vmem:[%s789] sm:$0xff]
        %v791 = vld [vmem:[%s789 + $0x8] sm:$0xff]
        %v792 = vld [vmem:[%s789 + $0x10] sm:$0xff]
        %v793 = vpack.c.bf16 %v783, %v783
        %794 = vmatpush.bf16.msra.mxu0 %v473
        %795 = vmatpush.bf16.msra.mxu0 %v470
        %796 = vmatpush.bf16.msra.mxu0 %v467
        %797 = vmatpush.bf16.msra.mxu0 %v464
        %798 = vmatpush.bf16.msra.mxu0 %v461
        %799 = vmatpush.bf16.msra.mxu0 %v458
        %800 = vmatpush.bf16.msra.mxu0 %v455
        %801 = vmatpush.bf16.msra.mxu0 %v452
        %802 = vmatmul.bf16.gmra.mxu0 %v793
        %v803 = vpop.f32.mrf.mxu0
        %v804 = vadd.f32 0.0, %v803
        %v805 = vpop.f32.mrf.mxu0
        %806 = vdwg.mxu0
        %807 = vmatpush.bf16.msra.mxu0 %v474
        %808 = vmatpush.bf16.msra.mxu0 %v471
        %809 = vmatpush.bf16.msra.mxu0 %v468
        %810 = vmatpush.bf16.msra.mxu0 %v465
        %811 = vmatpush.bf16.msra.mxu0 %v462
        %812 = vmatpush.bf16.msra.mxu0 %v459
        %813 = vmatpush.bf16.msra.mxu0 %v456
        %814 = vmatpush.bf16.msra.mxu0 %v453
        %815 = vmatmul.bf16.gmra.mxu0 %v793
        %v816 = vpop.f32.mrf.mxu0
        %v817 = vadd.f32 0.0, %v816
        %v818 = vpop.f32.mrf.mxu0
        %819 = vdwg.mxu0
        %820 = vmatpush.bf16.msra.mxu0 %v475
        %821 = vmatpush.bf16.msra.mxu0 %v472
        %822 = vmatpush.bf16.msra.mxu0 %v469
        %823 = vmatpush.bf16.msra.mxu0 %v466
        %824 = vmatpush.bf16.msra.mxu0 %v463
        %825 = vmatpush.bf16.msra.mxu0 %v460
        %826 = vmatpush.bf16.msra.mxu0 %v457
        %827 = vmatpush.bf16.msra.mxu0 %v454
        %828 = vmatmul.bf16.gmra.mxu0 %v793
        %v829 = vpop.f32.mrf.mxu0
        %v830 = vadd.f32 0.0, %v829
        %v831 = vpop.f32.mrf.mxu0
        %832 = vdwg.mxu0
        %v833 = vadd.f32 %v790, %v804
        %v834 = vxor.u32 %v833, 2147483648
        %v835 = vmul.f32 %v834, 1.442695
        %v836 = vpow.pop %v835
        %v837 = vadd.f32 %v836, 1.0
        %v838 = vrcp.pop %v837
        %v839 = vmul.f32 %v837, %v838
        %v840 = vsub.f32 1.0, %v839
        %v841 = vmul.f32 %v838, %v840
        %v842 = vadd.f32 %v838, %v841
        %vm843 = vweird.f32 %v837
        %vm844 = vweird.f32 %v838
        %vm845 = vmor %vm843, %vm844
        %v846 = vsel %vm845, %v838, %v842
        %v847 = vand.u32 2147483647, %v837
        %vm848 = vcmp.eq.f32.partialorder %v847, 8.507059e+37
        %v849 = vand.u32 %v837, 2147483648
        %v850 = vor.u32 1.1754944e-38, %v849
        %v851 = vsel %vm848, %v850, %v846
        %v852 = vmul.f32 1.0, %v851
        %v853 = vadd.f32 %v791, %v817
        %v854 = vxor.u32 %v853, 2147483648
        %v855 = vmul.f32 %v854, 1.442695
        %v856 = vpow.pop %v855
        %v857 = vadd.f32 %v856, 1.0
        %v858 = vrcp.pop %v857
        %v859 = vmul.f32 %v857, %v858
        %v860 = vsub.f32 1.0, %v859
        %v861 = vmul.f32 %v858, %v860
        %v862 = vadd.f32 %v858, %v861
        %vm863 = vweird.f32 %v857
        %vm864 = vweird.f32 %v858
        %vm865 = vmor %vm863, %vm864
        %v866 = vsel %vm865, %v858, %v862
        %v867 = vand.u32 2147483647, %v857
        %vm868 = vcmp.eq.f32.partialorder %v867, 8.507059e+37
        %v869 = vand.u32 %v857, 2147483648
        %v870 = vor.u32 1.1754944e-38, %v869
        %v871 = vsel %vm868, %v870, %v866
        %v872 = vmul.f32 1.0, %v871
        %v873 = vadd.f32 %v830, %v580
        %v874 = vmul.f32 %v852, %v873
        %v875 = vadd.f32 %v792, %v874
        %v876 = vtanh.pop %v875
        %v877 = vsub.f32 1.0, %v872
        %v878 = vmul.f32 %v877, %v876
        %v879 = vmul.f32 %v872, %v783
        %v880 = vadd.f32 %v878, %v879
        %s881 = sadd.s32 %s328, 32
        %s882 = sshra.s32 %s881, 3
        %s883 = sand.u32 %s881, 7
        %s884 = smul.u32 %s882, 3
        %s885 = smul.addr %s884, 8
        %s886 = scalar_lea.vmem [#allocation2], %s885
        %v887 = vld [vmem:[%s886] sm:$0xff]
        %v888 = vld [vmem:[%s886 + $0x8] sm:$0xff]
        %v889 = vld [vmem:[%s886 + $0x10] sm:$0xff]
        %v890 = vpack.c.bf16 %v880, %v880
        %891 = vmatpush.bf16.msra.mxu0 %v473
        %892 = vmatpush.bf16.msra.mxu0 %v470
        %893 = vmatpush.bf16.msra.mxu0 %v467
        %894 = vmatpush.bf16.msra.mxu0 %v464
        %895 = vmatpush.bf16.msra.mxu0 %v461
        %896 = vmatpush.bf16.msra.mxu0 %v458
        %897 = vmatpush.bf16.msra.mxu0 %v455
        %898 = vmatpush.bf16.msra.mxu0 %v452
        %899 = vmatmul.bf16.gmra.mxu0 %v890
        %v900 = vpop.f32.mrf.mxu0
        %v901 = vadd.f32 0.0, %v900
        %v902 = vpop.f32.mrf.mxu0
        %903 = vdwg.mxu0
        %904 = vmatpush.bf16.msra.mxu0 %v474
        %905 = vmatpush.bf16.msra.mxu0 %v471
        %906 = vmatpush.bf16.msra.mxu0 %v468
        %907 = vmatpush.bf16.msra.mxu0 %v465
        %908 = vmatpush.bf16.msra.mxu0 %v462
        %909 = vmatpush.bf16.msra.mxu0 %v459
        %910 = vmatpush.bf16.msra.mxu0 %v456
        %911 = vmatpush.bf16.msra.mxu0 %v453
        %912 = vmatmul.bf16.gmra.mxu0 %v890
        %v913 = vpop.f32.mrf.mxu0
        %v914 = vadd.f32 0.0, %v913
        %v915 = vpop.f32.mrf.mxu0
        %916 = vdwg.mxu0
        %917 = vmatpush.bf16.msra.mxu0 %v475
        %918 = vmatpush.bf16.msra.mxu0 %v472
        %919 = vmatpush.bf16.msra.mxu0 %v469
        %920 = vmatpush.bf16.msra.mxu0 %v466
        %921 = vmatpush.bf16.msra.mxu0 %v463
        %922 = vmatpush.bf16.msra.mxu0 %v460
        %923 = vmatpush.bf16.msra.mxu0 %v457
        %924 = vmatpush.bf16.msra.mxu0 %v454
        %925 = vmatmul.bf16.gmra.mxu0 %v890
        %v926 = vpop.f32.mrf.mxu0
        %v927 = vadd.f32 0.0, %v926
        %v928 = vpop.f32.mrf.mxu0
        %929 = vdwg.mxu0
        %v930 = vadd.f32 %v887, %v901
        %v931 = vxor.u32 %v930, 2147483648
        %v932 = vmul.f32 %v931, 1.442695
        %v933 = vpow.pop %v932
        %v934 = vadd.f32 %v933, 1.0
        %v935 = vrcp.pop %v934
        %v936 = vmul.f32 %v934, %v935
        %v937 = vsub.f32 1.0, %v936
        %v938 = vmul.f32 %v935, %v937
        %v939 = vadd.f32 %v935, %v938
        %vm940 = vweird.f32 %v934
        %vm941 = vweird.f32 %v935
        %vm942 = vmor %vm940, %vm941
        %v943 = vsel %vm942, %v935, %v939
        %v944 = vand.u32 2147483647, %v934
        %vm945 = vcmp.eq.f32.partialorder %v944, 8.507059e+37
        %v946 = vand.u32 %v934, 2147483648
        %v947 = vor.u32 1.1754944e-38, %v946
        %v948 = vsel %vm945, %v947, %v943
        %v949 = vmul.f32 1.0, %v948
        %v950 = vadd.f32 %v888, %v914
        %v951 = vxor.u32 %v950, 2147483648
        %v952 = vmul.f32 %v951, 1.442695
        %v953 = vpow.pop %v952
        %v954 = vadd.f32 %v953, 1.0
        %v955 = vrcp.pop %v954
        %v956 = vmul.f32 %v954, %v955
        %v957 = vsub.f32 1.0, %v956
        %v958 = vmul.f32 %v955, %v957
        %v959 = vadd.f32 %v955, %v958
        %vm960 = vweird.f32 %v954
        %vm961 = vweird.f32 %v955
        %vm962 = vmor %vm960, %vm961
        %v963 = vsel %vm962, %v955, %v959
        %v964 = vand.u32 2147483647, %v954
        %vm965 = vcmp.eq.f32.partialorder %v964, 8.507059e+37
        %v966 = vand.u32 %v954, 2147483648
        %v967 = vor.u32 1.1754944e-38, %v966
        %v968 = vsel %vm965, %v967, %v963
        %v969 = vmul.f32 1.0, %v968
        %v970 = vadd.f32 %v927, %v580
        %v971 = vmul.f32 %v949, %v970
        %v972 = vadd.f32 %v889, %v971
        %v973 = vtanh.pop %v972
        %v974 = vsub.f32 1.0, %v969
        %v975 = vmul.f32 %v974, %v973
        %v976 = vmul.f32 %v969, %v880
        %v977 = vadd.f32 %v975, %v976
        %s978 = sadd.s32 %s328, 40
        %s979 = sshra.s32 %s978, 3
        %s980 = sand.u32 %s978, 7
        %s981 = smul.u32 %s979, 3
        %s982 = smul.addr %s981, 8
        %s983 = scalar_lea.vmem [#allocation2], %s982
        %v984 = vld [vmem:[%s983] sm:$0xff]
        %v985 = vld [vmem:[%s983 + $0x8] sm:$0xff]
        %v986 = vld [vmem:[%s983 + $0x10] sm:$0xff]
        %v987 = vpack.c.bf16 %v977, %v977
        %988 = vmatpush.bf16.msra.mxu0 %v473
        %989 = vmatpush.bf16.msra.mxu0 %v470
        %990 = vmatpush.bf16.msra.mxu0 %v467
        %991 = vmatpush.bf16.msra.mxu0 %v464
        %992 = vmatpush.bf16.msra.mxu0 %v461
        %993 = vmatpush.bf16.msra.mxu0 %v458
        %994 = vmatpush.bf16.msra.mxu0 %v455
        %995 = vmatpush.bf16.msra.mxu0 %v452
        %996 = vmatmul.bf16.gmra.mxu0 %v987
        %v997 = vpop.f32.mrf.mxu0
        %v998 = vadd.f32 0.0, %v997
        %v999 = vpop.f32.mrf.mxu0
        %1000 = vdwg.mxu0
        %1001 = vmatpush.bf16.msra.mxu0 %v474
        %1002 = vmatpush.bf16.msra.mxu0 %v471
        %1003 = vmatpush.bf16.msra.mxu0 %v468
        %1004 = vmatpush.bf16.msra.mxu0 %v465
        %1005 = vmatpush.bf16.msra.mxu0 %v462
        %1006 = vmatpush.bf16.msra.mxu0 %v459
        %1007 = vmatpush.bf16.msra.mxu0 %v456
        %1008 = vmatpush.bf16.msra.mxu0 %v453
        %1009 = vmatmul.bf16.gmra.mxu0 %v987
        %v1010 = vpop.f32.mrf.mxu0
        %v1011 = vadd.f32 0.0, %v1010
        %v1012 = vpop.f32.mrf.mxu0
        %1013 = vdwg.mxu0
        %1014 = vmatpush.bf16.msra.mxu0 %v475
        %1015 = vmatpush.bf16.msra.mxu0 %v472
        %1016 = vmatpush.bf16.msra.mxu0 %v469
        %1017 = vmatpush.bf16.msra.mxu0 %v466
        %1018 = vmatpush.bf16.msra.mxu0 %v463
        %1019 = vmatpush.bf16.msra.mxu0 %v460
        %1020 = vmatpush.bf16.msra.mxu0 %v457
        %1021 = vmatpush.bf16.msra.mxu0 %v454
        %1022 = vmatmul.bf16.gmra.mxu0 %v987
        %v1023 = vpop.f32.mrf.mxu0
        %v1024 = vadd.f32 0.0, %v1023
        %v1025 = vpop.f32.mrf.mxu0
        %1026 = vdwg.mxu0
        %v1027 = vadd.f32 %v984, %v998
        %v1028 = vxor.u32 %v1027, 2147483648
        %v1029 = vmul.f32 %v1028, 1.442695
        %v1030 = vpow.pop %v1029
        %v1031 = vadd.f32 %v1030, 1.0
        %v1032 = vrcp.pop %v1031
        %v1033 = vmul.f32 %v1031, %v1032
        %v1034 = vsub.f32 1.0, %v1033
        %v1035 = vmul.f32 %v1032, %v1034
        %v1036 = vadd.f32 %v1032, %v1035
        %vm1037 = vweird.f32 %v1031
        %vm1038 = vweird.f32 %v1032
        %vm1039 = vmor %vm1037, %vm1038
        %v1040 = vsel %vm1039, %v1032, %v1036
        %v1041 = vand.u32 2147483647, %v1031
        %vm1042 = vcmp.eq.f32.partialorder %v1041, 8.507059e+37
        %v1043 = vand.u32 %v1031, 2147483648
        %v1044 = vor.u32 1.1754944e-38, %v1043
        %v1045 = vsel %vm1042, %v1044, %v1040
        %v1046 = vmul.f32 1.0, %v1045
        %v1047 = vadd.f32 %v985, %v1011
        %v1048 = vxor.u32 %v1047, 2147483648
        %v1049 = vmul.f32 %v1048, 1.442695
        %v1050 = vpow.pop %v1049
        %v1051 = vadd.f32 %v1050, 1.0
        %v1052 = vrcp.pop %v1051
        %v1053 = vmul.f32 %v1051, %v1052
        %v1054 = vsub.f32 1.0, %v1053
        %v1055 = vmul.f32 %v1052, %v1054
        %v1056 = vadd.f32 %v1052, %v1055
        %vm1057 = vweird.f32 %v1051
        %vm1058 = vweird.f32 %v1052
        %vm1059 = vmor %vm1057, %vm1058
        %v1060 = vsel %vm1059, %v1052, %v1056
        %v1061 = vand.u32 2147483647, %v1051
        %vm1062 = vcmp.eq.f32.partialorder %v1061, 8.507059e+37
        %v1063 = vand.u32 %v1051, 2147483648
        %v1064 = vor.u32 1.1754944e-38, %v1063
        %v1065 = vsel %vm1062, %v1064, %v1060
        %v1066 = vmul.f32 1.0, %v1065
        %v1067 = vadd.f32 %v1024, %v580
        %v1068 = vmul.f32 %v1046, %v1067
        %v1069 = vadd.f32 %v986, %v1068
        %v1070 = vtanh.pop %v1069
        %v1071 = vsub.f32 1.0, %v1066
        %v1072 = vmul.f32 %v1071, %v1070
        %v1073 = vmul.f32 %v1066, %v977
        %v1074 = vadd.f32 %v1072, %v1073
        %s1075 = sadd.s32 %s328, 48
        %s1076 = sshra.s32 %s1075, 3
        %s1077 = sand.u32 %s1075, 7
        %s1078 = smul.u32 %s1076, 3
        %s1079 = smul.addr %s1078, 8
        %s1080 = scalar_lea.vmem [#allocation2], %s1079
        %v1081 = vld [vmem:[%s1080] sm:$0xff]
        %v1082 = vld [vmem:[%s1080 + $0x8] sm:$0xff]
        %v1083 = vld [vmem:[%s1080 + $0x10] sm:$0xff]
        %v1084 = vpack.c.bf16 %v1074, %v1074
        %1085 = vmatpush.bf16.msra.mxu0 %v473
        %1086 = vmatpush.bf16.msra.mxu0 %v470
        %1087 = vmatpush.bf16.msra.mxu0 %v467
        %1088 = vmatpush.bf16.msra.mxu0 %v464
        %1089 = vmatpush.bf16.msra.mxu0 %v461
        %1090 = vmatpush.bf16.msra.mxu0 %v458
        %1091 = vmatpush.bf16.msra.mxu0 %v455
        %1092 = vmatpush.bf16.msra.mxu0 %v452
        %1093 = vmatmul.bf16.gmra.mxu0 %v1084
        %v1094 = vpop.f32.mrf.mxu0
        %v1095 = vadd.f32 0.0, %v1094
        %v1096 = vpop.f32.mrf.mxu0
        %1097 = vdwg.mxu0
        %1098 = vmatpush.bf16.msra.mxu0 %v474
        %1099 = vmatpush.bf16.msra.mxu0 %v471
        %1100 = vmatpush.bf16.msra.mxu0 %v468
        %1101 = vmatpush.bf16.msra.mxu0 %v465
        %1102 = vmatpush.bf16.msra.mxu0 %v462
        %1103 = vmatpush.bf16.msra.mxu0 %v459
        %1104 = vmatpush.bf16.msra.mxu0 %v456
        %1105 = vmatpush.bf16.msra.mxu0 %v453
        %1106 = vmatmul.bf16.gmra.mxu0 %v1084
        %v1107 = vpop.f32.mrf.mxu0
        %v1108 = vadd.f32 0.0, %v1107
        %v1109 = vpop.f32.mrf.mxu0
        %1110 = vdwg.mxu0
        %1111 = vmatpush.bf16.msra.mxu0 %v475
        %1112 = vmatpush.bf16.msra.mxu0 %v472
        %1113 = vmatpush.bf16.msra.mxu0 %v469
        %1114 = vmatpush.bf16.msra.mxu0 %v466
        %1115 = vmatpush.bf16.msra.mxu0 %v463
        %1116 = vmatpush.bf16.msra.mxu0 %v460
        %1117 = vmatpush.bf16.msra.mxu0 %v457
        %1118 = vmatpush.bf16.msra.mxu0 %v454
        %1119 = vmatmul.bf16.gmra.mxu0 %v1084
        %v1120 = vpop.f32.mrf.mxu0
        %v1121 = vadd.f32 0.0, %v1120
        %v1122 = vpop.f32.mrf.mxu0
        %1123 = vdwg.mxu0
        %v1124 = vadd.f32 %v1081, %v1095
        %v1125 = vxor.u32 %v1124, 2147483648
        %v1126 = vmul.f32 %v1125, 1.442695
        %v1127 = vpow.pop %v1126
        %v1128 = vadd.f32 %v1127, 1.0
        %v1129 = vrcp.pop %v1128
        %v1130 = vmul.f32 %v1128, %v1129
        %v1131 = vsub.f32 1.0, %v1130
        %v1132 = vmul.f32 %v1129, %v1131
        %v1133 = vadd.f32 %v1129, %v1132
        %vm1134 = vweird.f32 %v1128
        %vm1135 = vweird.f32 %v1129
        %vm1136 = vmor %vm1134, %vm1135
        %v1137 = vsel %vm1136, %v1129, %v1133
        %v1138 = vand.u32 2147483647, %v1128
        %vm1139 = vcmp.eq.f32.partialorder %v1138, 8.507059e+37
        %v1140 = vand.u32 %v1128, 2147483648
        %v1141 = vor.u32 1.1754944e-38, %v1140
        %v1142 = vsel %vm1139, %v1141, %v1137
        %v1143 = vmul.f32 1.0, %v1142
        %v1144 = vadd.f32 %v1082, %v1108
        %v1145 = vxor.u32 %v1144, 2147483648
        %v1146 = vmul.f32 %v1145, 1.442695
        %v1147 = vpow.pop %v1146
        %v1148 = vadd.f32 %v1147, 1.0
        %v1149 = vrcp.pop %v1148
        %v1150 = vmul.f32 %v1148, %v1149
        %v1151 = vsub.f32 1.0, %v1150
        %v1152 = vmul.f32 %v1149, %v1151
        %v1153 = vadd.f32 %v1149, %v1152
        %vm1154 = vweird.f32 %v1148
        %vm1155 = vweird.f32 %v1149
        %vm1156 = vmor %vm1154, %vm1155
        %v1157 = vsel %vm1156, %v1149, %v1153
        %v1158 = vand.u32 2147483647, %v1148
        %vm1159 = vcmp.eq.f32.partialorder %v1158, 8.507059e+37
        %v1160 = vand.u32 %v1148, 2147483648
        %v1161 = vor.u32 1.1754944e-38, %v1160
        %v1162 = vsel %vm1159, %v1161, %v1157
        %v1163 = vmul.f32 1.0, %v1162
        %v1164 = vadd.f32 %v1121, %v580
        %v1165 = vmul.f32 %v1143, %v1164
        %v1166 = vadd.f32 %v1083, %v1165
        %v1167 = vtanh.pop %v1166
        %v1168 = vsub.f32 1.0, %v1163
        %v1169 = vmul.f32 %v1168, %v1167
        %v1170 = vmul.f32 %v1163, %v1074
        %v1171 = vadd.f32 %v1169, %v1170
        %s1172 = sadd.s32 %s328, 56
        %s1173 = sshra.s32 %s1172, 3
        %s1174 = sand.u32 %s1172, 7
        %s1175 = smul.u32 %s1173, 3
        %s1176 = smul.addr %s1175, 8
        %s1177 = scalar_lea.vmem [#allocation2], %s1176
        %v1178 = vld [vmem:[%s1177] sm:$0xff]
        %v1179 = vld [vmem:[%s1177 + $0x8] sm:$0xff]
        %v1180 = vld [vmem:[%s1177 + $0x10] sm:$0xff]
        %v1181 = vpack.c.bf16 %v1171, %v1171
        %1182 = vmatpush.bf16.msra.mxu0 %v473
        %1183 = vmatpush.bf16.msra.mxu0 %v470
        %1184 = vmatpush.bf16.msra.mxu0 %v467
        %1185 = vmatpush.bf16.msra.mxu0 %v464
        %1186 = vmatpush.bf16.msra.mxu0 %v461
        %1187 = vmatpush.bf16.msra.mxu0 %v458
        %1188 = vmatpush.bf16.msra.mxu0 %v455
        %1189 = vmatpush.bf16.msra.mxu0 %v452
        %1190 = vmatmul.bf16.gmra.mxu0 %v1181
        %v1191 = vpop.f32.mrf.mxu0
        %v1192 = vadd.f32 0.0, %v1191
        %v1193 = vpop.f32.mrf.mxu0
        %1194 = vdwg.mxu0
        %1195 = vmatpush.bf16.msra.mxu0 %v474
        %1196 = vmatpush.bf16.msra.mxu0 %v471
        %1197 = vmatpush.bf16.msra.mxu0 %v468
        %1198 = vmatpush.bf16.msra.mxu0 %v465
        %1199 = vmatpush.bf16.msra.mxu0 %v462
        %1200 = vmatpush.bf16.msra.mxu0 %v459
        %1201 = vmatpush.bf16.msra.mxu0 %v456
        %1202 = vmatpush.bf16.msra.mxu0 %v453
        %1203 = vmatmul.bf16.gmra.mxu0 %v1181
        %v1204 = vpop.f32.mrf.mxu0
        %v1205 = vadd.f32 0.0, %v1204
        %v1206 = vpop.f32.mrf.mxu0
        %1207 = vdwg.mxu0
        %1208 = vmatpush.bf16.msra.mxu0 %v475
        %1209 = vmatpush.bf16.msra.mxu0 %v472
        %1210 = vmatpush.bf16.msra.mxu0 %v469
        %1211 = vmatpush.bf16.msra.mxu0 %v466
        %1212 = vmatpush.bf16.msra.mxu0 %v463
        %1213 = vmatpush.bf16.msra.mxu0 %v460
        %1214 = vmatpush.bf16.msra.mxu0 %v457
        %1215 = vmatpush.bf16.msra.mxu0 %v454
        %1216 = vmatmul.bf16.gmra.mxu0 %v1181
        %v1217 = vpop.f32.mrf.mxu0
        %v1218 = vadd.f32 0.0, %v1217
        %v1219 = vpop.f32.mrf.mxu0
        %1220 = vdwg.mxu0
        %v1221 = vadd.f32 %v1178, %v1192
        %v1222 = vxor.u32 %v1221, 2147483648
        %v1223 = vmul.f32 %v1222, 1.442695
        %v1224 = vpow.pop %v1223
        %v1225 = vadd.f32 %v1224, 1.0
        %v1226 = vrcp.pop %v1225
        %v1227 = vmul.f32 %v1225, %v1226
        %v1228 = vsub.f32 1.0, %v1227
        %v1229 = vmul.f32 %v1226, %v1228
        %v1230 = vadd.f32 %v1226, %v1229
        %vm1231 = vweird.f32 %v1225
        %vm1232 = vweird.f32 %v1226
        %vm1233 = vmor %vm1231, %vm1232
        %v1234 = vsel %vm1233, %v1226, %v1230
        %v1235 = vand.u32 2147483647, %v1225
        %vm1236 = vcmp.eq.f32.partialorder %v1235, 8.507059e+37
        %v1237 = vand.u32 %v1225, 2147483648
        %v1238 = vor.u32 1.1754944e-38, %v1237
        %v1239 = vsel %vm1236, %v1238, %v1234
        %v1240 = vmul.f32 1.0, %v1239
        %v1241 = vadd.f32 %v1179, %v1205
        %v1242 = vxor.u32 %v1241, 2147483648
        %v1243 = vmul.f32 %v1242, 1.442695
        %v1244 = vpow.pop %v1243
        %v1245 = vadd.f32 %v1244, 1.0
        %v1246 = vrcp.pop %v1245
        %v1247 = vmul.f32 %v1245, %v1246
        %v1248 = vsub.f32 1.0, %v1247
        %v1249 = vmul.f32 %v1246, %v1248
        %v1250 = vadd.f32 %v1246, %v1249
        %vm1251 = vweird.f32 %v1245
        %vm1252 = vweird.f32 %v1246
        %vm1253 = vmor %vm1251, %vm1252
        %v1254 = vsel %vm1253, %v1246, %v1250
        %v1255 = vand.u32 2147483647, %v1245
        %vm1256 = vcmp.eq.f32.partialorder %v1255, 8.507059e+37
        %v1257 = vand.u32 %v1245, 2147483648
        %v1258 = vor.u32 1.1754944e-38, %v1257
        %v1259 = vsel %vm1256, %v1258, %v1254
        %v1260 = vmul.f32 1.0, %v1259
        %v1261 = vadd.f32 %v1218, %v580
        %v1262 = vmul.f32 %v1240, %v1261
        %v1263 = vadd.f32 %v1180, %v1262
        %v1264 = vtanh.pop %v1263
        %v1265 = vsub.f32 1.0, %v1260
        %v1266 = vmul.f32 %v1265, %v1264
        %v1267 = vmul.f32 %v1260, %v1171
        %v1268 = vadd.f32 %v1266, %v1267
        %p1269 = scmp.lt.s32.totalorder %s21, 0
        %s1270 = ssub.s32 0, %s21
        %s1271 = scalar_select %p1269, %s1270, %s21
        %s1272 = sand.u32 %s1271, 1
        %s1273 = ssub.s32 0, %s1272
        %s1274 = scalar_select %p1269, %s1273, %s1272
        %v1275 = vld [vmem:[%s311] sm:$0xf]
        %v1276 = vld [vmem:[%s311 + $0x4] sm:$0xf]
        %v1277 = vld [vmem:[%s311 + $0x8] sm:$0xf]
        %v1278 = vld [vmem:[%s311 + $0xc] sm:$0xf]
        %v1279 = vld [vmem:[%s311 + $0x10] sm:$0xf]
        %v1280 = vld [vmem:[%s311 + $0x14] sm:$0xf]
        %v1281 = vld [vmem:[%s311 + $0x18] sm:$0xf]
        %v1282 = vld [vmem:[%s311 + $0x1c] sm:$0xf]
        %v1283 = vld [vmem:[%s1] sm:$0xff]
        %v1284 = vld [vmem:[%s1 + $0x8] sm:$0xf]
        %v1285 = vld [vmem:[%s1 + $0xc] sm:$0xff]
        %v1286 = vld [vmem:[%s1 + $0x14] sm:$0xf]
        %v1287 = vld [vmem:[%s3] sm:$0x7]
        %v1289 = vperm.slane %v1287, 0
        %v1290 = vperm.slane %v1287, 1
        %v1291 = vperm.slane %v1287, 2
        %v1303 = vunpack.c.l.b16 %v1275
        %v1304 = vunpack.c.l.b16 %v1276
        %v1305 = vunpack.c.l.b16 %v1277
        %v1306 = vunpack.c.l.b16 %v1278
        %v1307 = vunpack.c.l.b16 %v1279
        %v1308 = vunpack.c.l.b16 %v1280
        %v1309 = vunpack.c.l.b16 %v1281
        %v1310 = vunpack.c.l.b16 %v1282
        %v1311 = vpack.c.b16 %v1304, %v1303
        %v1312 = vpack.c.b16 %v1306, %v1305
        %v1313 = vpack.c.b16 %v1308, %v1307
        %v1314 = vpack.c.b16 %v1310, %v1309
        %v1319 = vunpack.c.l.b16 %v1283
        %v1320 = vunpack.c.h.b16 %v1283
        %v1321 = vunpack.c.l.b16 %v1284
        %v1322 = vunpack.c.l.b16 %v1285
        %v1323 = vunpack.c.h.b16 %v1285
        %v1324 = vunpack.c.l.b16 %v1286
        %v1325 = vpack.c.b16 %v1322, %v1319
        %v1326 = vpack.c.b16 %v1323, %v1320
        %v1327 = vpack.c.b16 %v1324, %v1321
        %vm1331 = vcmask 130048
        %v1333 = vsel %vm1331, %v1311, 0
        %v1336 = vsel %vm1331, %v1312, 0
        %v1339 = vsel %vm1331, %v1313, 0
        %v1342 = vsel %vm1331, %v1314, 0
        %1344 = vmatpush.bf16.msra.mxu0 0
        %1345 = vmatpush.bf16.msra.mxu0 0
        %1346 = vmatpush.bf16.msra.mxu0 0
        %1347 = vmatpush.bf16.msra.mxu0 0
        %1348 = vmatpush.bf16.msra.mxu0 0
        %1349 = vmatpush.bf16.msra.mxu0 0
        %1350 = vmatpush.bf16.msra.mxu0 0
        %1351 = vmatpush.bf16.msra.mxu0 %v1325
        %1352 = vmatmul.bf16.gmra.mxu0 %v1333
        %v1353 = vpop.f32.mrf.mxu0
        %v1354 = vadd.f32 %v1289, %v1353
        %v1355 = vpop.f32.mrf.mxu0
        %v1356 = vadd.f32 %v1289, %v1355
        %1357 = vmatmul.bf16.gmra.mxu0 %v1336
        %v1358 = vpop.f32.mrf.mxu0
        %v1359 = vadd.f32 %v1289, %v1358
        %v1360 = vpop.f32.mrf.mxu0
        %v1361 = vadd.f32 %v1289, %v1360
        %1362 = vmatmul.bf16.gmra.mxu0 %v1339
        %v1363 = vpop.f32.mrf.mxu0
        %v1364 = vadd.f32 %v1289, %v1363
        %v1365 = vpop.f32.mrf.mxu0
        %v1366 = vadd.f32 %v1289, %v1365
        %1367 = vmatmul.bf16.gmra.mxu0 %v1342
        %v1368 = vpop.f32.mrf.mxu0
        %v1369 = vadd.f32 %v1289, %v1368
        %v1370 = vpop.f32.mrf.mxu0
        %v1371 = vadd.f32 %v1289, %v1370
        %1372 = vdwg.mxu0
        %1373 = vmatpush.bf16.msra.mxu0 0
        %1374 = vmatpush.bf16.msra.mxu0 0
        %1375 = vmatpush.bf16.msra.mxu0 0
        %1376 = vmatpush.bf16.msra.mxu0 0
        %1377 = vmatpush.bf16.msra.mxu0 0
        %1378 = vmatpush.bf16.msra.mxu0 0
        %1379 = vmatpush.bf16.msra.mxu0 0
        %1380 = vmatpush.bf16.msra.mxu0 %v1326
        %1381 = vmatmul.bf16.gmra.mxu0 %v1333
        %v1382 = vpop.f32.mrf.mxu0
        %v1383 = vadd.f32 %v1290, %v1382
        %v1384 = vpop.f32.mrf.mxu0
        %v1385 = vadd.f32 %v1290, %v1384
        %1386 = vmatmul.bf16.gmra.mxu0 %v1336
        %v1387 = vpop.f32.mrf.mxu0
        %v1388 = vadd.f32 %v1290, %v1387
        %v1389 = vpop.f32.mrf.mxu0
        %v1390 = vadd.f32 %v1290, %v1389
        %1391 = vmatmul.bf16.gmra.mxu0 %v1339
        %v1392 = vpop.f32.mrf.mxu0
        %v1393 = vadd.f32 %v1290, %v1392
        %v1394 = vpop.f32.mrf.mxu0
        %v1395 = vadd.f32 %v1290, %v1394
        %1396 = vmatmul.bf16.gmra.mxu0 %v1342
        %v1397 = vpop.f32.mrf.mxu0
        %v1398 = vadd.f32 %v1290, %v1397
        %v1399 = vpop.f32.mrf.mxu0
        %v1400 = vadd.f32 %v1290, %v1399
        %1401 = vdwg.mxu0
        %1402 = vmatpush.bf16.msra.mxu0 0
        %1403 = vmatpush.bf16.msra.mxu0 0
        %1404 = vmatpush.bf16.msra.mxu0 0
        %1405 = vmatpush.bf16.msra.mxu0 0
        %1406 = vmatpush.bf16.msra.mxu0 0
        %1407 = vmatpush.bf16.msra.mxu0 0
        %1408 = vmatpush.bf16.msra.mxu0 0
        %1409 = vmatpush.bf16.msra.mxu0 %v1327
        %1410 = vmatmul.bf16.gmra.mxu0 %v1333
        %v1411 = vpop.f32.mrf.mxu0
        %v1412 = vadd.f32 %v1291, %v1411
        %v1413 = vpop.f32.mrf.mxu0
        %v1414 = vadd.f32 %v1291, %v1413
        %1415 = vmatmul.bf16.gmra.mxu0 %v1336
        %v1416 = vpop.f32.mrf.mxu0
        %v1417 = vadd.f32 %v1291, %v1416
        %v1418 = vpop.f32.mrf.mxu0
        %v1419 = vadd.f32 %v1291, %v1418
        %1420 = vmatmul.bf16.gmra.mxu0 %v1339
        %v1421 = vpop.f32.mrf.mxu0
        %v1422 = vadd.f32 %v1291, %v1421
        %v1423 = vpop.f32.mrf.mxu0
        %v1424 = vadd.f32 %v1291, %v1423
        %1425 = vmatmul.bf16.gmra.mxu0 %v1342
        %v1426 = vpop.f32.mrf.mxu0
        %v1427 = vadd.f32 %v1291, %v1426
        %v1428 = vpop.f32.mrf.mxu0
        %v1429 = vadd.f32 %v1291, %v1428
        %1430 = vdwg.mxu0
        %s1431 = smul.u32 %s1274, 64
        %s1432 = sshra.s32 %s1431, 3
        %s1433 = sand.u32 %s1431, 7
        %s1434 = smul.u32 %s1432, 3
        %s1435 = smul.addr %s1434, 8
        %s1436 = scalar_lea.vmem [#allocation2], %s1435
        %1437 = vst [vmem:[%s1436] sm:$0xff] %v1354
        %1438 = vst [vmem:[%s1436 + $0x8] sm:$0xff] %v1383
        %1439 = vst [vmem:[%s1436 + $0x10] sm:$0xff] %v1412
        %1440 = vst [vmem:[%s1436 + $0x18] sm:$0xff] %v1356
        %1441 = vst [vmem:[%s1436 + $0x20] sm:$0xff] %v1385
        %1442 = vst [vmem:[%s1436 + $0x28] sm:$0xff] %v1414
        %1443 = vst [vmem:[%s1436 + $0x30] sm:$0xff] %v1359
        %1444 = vst [vmem:[%s1436 + $0x38] sm:$0xff] %v1388
        %1445 = vst [vmem:[%s1436 + $0x40] sm:$0xff] %v1417
        %1446 = vst [vmem:[%s1436 + $0x48] sm:$0xff] %v1361
        %1447 = vst [vmem:[%s1436 + $0x50] sm:$0xff] %v1390
        %1448 = vst [vmem:[%s1436 + $0x58] sm:$0xff] %v1419
        %1449 = vst [vmem:[%s1436 + $0x60] sm:$0xff] %v1364
        %1450 = vst [vmem:[%s1436 + $0x68] sm:$0xff] %v1393
        %1451 = vst [vmem:[%s1436 + $0x70] sm:$0xff] %v1422
        %1452 = vst [vmem:[%s1436 + $0x78] sm:$0xff] %v1366
        %1453 = vst [vmem:[%s1436 + $0x80] sm:$0xff] %v1395
        %1454 = vst [vmem:[%s1436 + $0x88] sm:$0xff] %v1424
        %1455 = vst [vmem:[%s1436 + $0x90] sm:$0xff] %v1369
        %1456 = vst [vmem:[%s1436 + $0x98] sm:$0xff] %v1398
        %1457 = vst [vmem:[%s1436 + $0xa0] sm:$0xff] %v1427
        %1458 = vst [vmem:[%s1436 + $0xa8] sm:$0xff] %v1371
        %1459 = vst [vmem:[%s1436 + $0xb0] sm:$0xff] %v1400
        %1460 = vst [vmem:[%s1436 + $0xb8] sm:$0xff] %v1429
        %p1461 = scmp.ge.s32.totalorder %s21, 1
        // Predicated region
        $region61: #{tpu_custom_call.1} parent=47 // pred_check
          %p1462 = pneg %p1461
        $region62: #{tpu_custom_call.1} parent=47 // pred_check_branch
          %1464 = sbr.rel (%p1462) target = $region64
        $region63: #{tpu_custom_call.1} parent=47 // pred_region
          %1465 = vst [vmem:[#allocation3] sm:$0xff] %v1268
        $region64: #{tpu_custom_call.1} parent=47 // pred_fallthru
          _
        %p1466 = scmp.eq.s32.totalorder %s21, 1
        // Predicated region
        $region65: #{tpu_custom_call.1} parent=47 // pred_check
          %p1467 = pneg %p1466
        $region66: #{tpu_custom_call.1} parent=47 // pred_check_branch
          %1469 = sbr.rel (%p1467) target = $region68
        $region67: #{tpu_custom_call.1} parent=47 // pred_region
          %v1470 = vpack.c.bf16 %v1268, %v1268
          %v1471 = vld [vmem:[#allocation7] sm:$0xf]
          %v1472 = vld [vmem:[#allocation7 + $0x4] sm:$0xf]
          %v1473 = vld [vmem:[#allocation7 + $0x8] sm:$0xf]
          %v1474 = vld [vmem:[#allocation7 + $0xc] sm:$0xf]
          %v1475 = vld [vmem:[#allocation7 + $0x10] sm:$0xf]
          %v1476 = vld [vmem:[#allocation7 + $0x14] sm:$0xf]
          %v1477 = vld [vmem:[#allocation7 + $0x18] sm:$0xf]
          %v1478 = vld [vmem:[#allocation7 + $0x1c] sm:$0xf]
          %v1479 = vld [vmem:[#allocation7 + $0x20] sm:$0xf]
          %v1480 = vld [vmem:[#allocation7 + $0x24] sm:$0xf]
          %v1481 = vld [vmem:[#allocation7 + $0x28] sm:$0xf]
          %v1482 = vld [vmem:[#allocation7 + $0x2c] sm:$0xf]
          %v1483 = vld [vmem:[#allocation7 + $0x30] sm:$0xf]
          %v1484 = vld [vmem:[#allocation7 + $0x34] sm:$0xf]
          %v1485 = vld [vmem:[#allocation7 + $0x38] sm:$0xf]
          %v1486 = vld [vmem:[#allocation7 + $0x3c] sm:$0xf]
          %v1487 = vld [vmem:[%s6] sm:$0x1]
          %v1489 = vperm.slane %v1487, 0
          %v1507 = vunpack.c.l.b16 %v1471
          %v1508 = vunpack.c.l.b16 %v1472
          %v1509 = vunpack.c.l.b16 %v1473
          %v1510 = vunpack.c.l.b16 %v1474
          %v1511 = vunpack.c.l.b16 %v1475
          %v1512 = vunpack.c.l.b16 %v1476
          %v1513 = vunpack.c.l.b16 %v1477
          %v1514 = vunpack.c.l.b16 %v1478
          %v1515 = vunpack.c.l.b16 %v1479
          %v1516 = vunpack.c.l.b16 %v1480
          %v1517 = vunpack.c.l.b16 %v1481
          %v1518 = vunpack.c.l.b16 %v1482
          %v1519 = vunpack.c.l.b16 %v1483
          %v1520 = vunpack.c.l.b16 %v1484
          %v1521 = vunpack.c.l.b16 %v1485
          %v1522 = vunpack.c.l.b16 %v1486
          %v1523 = vpack.c.b16 %v1508, %v1507
          %v1524 = vpack.c.b16 %v1510, %v1509
          %v1525 = vpack.c.b16 %v1512, %v1511
          %v1526 = vpack.c.b16 %v1514, %v1513
          %v1527 = vpack.c.b16 %v1516, %v1515
          %v1528 = vpack.c.b16 %v1518, %v1517
          %v1529 = vpack.c.b16 %v1520, %v1519
          %v1530 = vpack.c.b16 %v1522, %v1521
          %1539 = vmatpush.bf16.msra.mxu0 %v1530
          %1540 = vmatpush.bf16.msra.mxu0 %v1529
          %1541 = vmatpush.bf16.msra.mxu0 %v1528
          %1542 = vmatpush.bf16.msra.mxu0 %v1527
          %1543 = vmatpush.bf16.msra.mxu0 %v1526
          %1544 = vmatpush.bf16.msra.mxu0 %v1525
          %1545 = vmatpush.bf16.msra.mxu0 %v1524
          %1546 = vmatpush.bf16.msra.mxu0 %v1523
          %1547 = vmatmul.bf16.gmra.mxu0 %v1470
          %v1548 = vpop.f32.mrf.mxu0
          %v1549 = vadd.f32 %v1489, %v1548
          %v1550 = vpop.f32.mrf.mxu0
          %1551 = vdwg.mxu0
          %1552 = vst [vmem:[#allocation9] sm:$0xff] %v1549
        $region68: #{tpu_custom_call.1} parent=47 // pred_fallthru
          _
        // Predicated region
        $region69: #{tpu_custom_call.1} parent=47 // pred_check
          %p1553 = pneg %p190
        $region70: #{tpu_custom_call.1} parent=47 // pred_check_branch
          %1555 = sbr.rel (%p1553) target = $region72
        $region71: #{tpu_custom_call.1} parent=47 // pred_region
          %1557 = vsyncadd [#allocation6], 0
          %s1559 = sshll.u32 [#allocation9], 4
          %s1560 = int_to_ptr.vmem [resolvable:$true] %s1559
          %s1561 = sshll.u32 %s7, 4
          %s1562 = int_to_ptr.hbm [resolvable:$true] %s1561
          %1564 = dma.vmem_to_hbm [thread:$0]  %s1560, 128, %s1562, [#allocation6]
        $region72: #{tpu_custom_call.1} parent=47 // pred_fallthru
          _
        // Predicated region
        $region73: #{tpu_custom_call.1} parent=47 // pred_check
          %p1565 = pneg %p190
        $region74: #{tpu_custom_call.1} parent=47 // pred_check_branch
          %1567 = sbr.rel (%p1565) target = $region76
        $region75: #{tpu_custom_call.1} parent=47 // pred_region
          %1569 = dma.done [#allocation6], 128
        $region76: #{tpu_custom_call.1} parent=47 // pred_fallthru
          _
      $region48: #{tpu_custom_call.1} parent=5 // pred_fallthru
        _
      %p1570 = scmp.le.s32.totalorder 2, %s16
      // Predicated region
      $region77: #{tpu_custom_call.1} parent=5 // pred_check
        %p1571 = pneg %p1570
      $region78: #{tpu_custom_call.1} parent=5 // pred_check_branch
        %1573 = sbr.rel (%p1571) target = $region80
      $region79: #{tpu_custom_call.1} parent=5 // pred_region
        %s1574 = ssub.s32 %s16, 2
      $region80: #{tpu_custom_call.1} parent=5 // pred_fallthru
        _
    $region6: #{tpu_custom_call.1} parent=1 // loop_footer
      %s20 = sadd.s32 1, %s16
    $region7: #{tpu_custom_call.1} parent=1 // loop_footer_branch
      %15 = sbr.rel target = $region3
    $region8: #{tpu_custom_call.1} parent=1 // loop_exit
      _
    %1575 = vsyncpa [#allocation5], 1
    %s1576 = scalar_lea.sflag [#allocation5], 1
    %1577 = vsyncpa %s1576, 1
    %1578 = vsyncpa [#allocation8], 1
    %1579 = vsyncpa [#allocation6], 1
    %s1580 = scalar_lea.sflag [#allocation6], 1
    %1581 = vsyncpa %s1580, 1

</llo_original>
